<compile_context>
chip_gen: v5e
topology: v5e:2x2
jax: 0.10.0
libtpu: 0.0.40
codegen_flags: <defaults>
</compile_context>

<pallas_src>
import functools

import jax
import jax.numpy as jnp
from jax.experimental import pallas as pl
from jax.experimental.pallas import tpu as pltpu


def _round_up(n, m):
    return ((n + m - 1) // m) * m


def mlp_kernel(x_ref, w1_ref, b1_ref, w2_ref, b2_ref, w3_ref, b3_ref, o_ref):
    """Fused linear1+relu -> linear2+relu -> linear3 on one (batch_tile, d_in) tile.

    x_ref arrives in its producer dtype (f32 or bf16) and is cast to the weight dtype
    on the VPU here (hidden under the input DMA).  Weights are bf16 (in, out); biases
    are f32 (1, out).  All matmuls accumulate in f32 on the MXU; bias-add / ReLU stay
    in f32 (v5e-safe: no bf16 VPU there).
    """
    x = x_ref[...].astype(w1_ref.dtype)

    # linear_1 + relu_1
    h1 = jnp.dot(x, w1_ref[...], preferred_element_type=jnp.float32) + b1_ref[...]
    h1 = jnp.maximum(h1, 0.0)

    # linear_2 + relu_2
    h2 = (
        jnp.dot(h1.astype(w2_ref.dtype), w2_ref[...],
                preferred_element_type=jnp.float32)
        + b2_ref[...]
    )
    h2 = jnp.maximum(h2, 0.0)

    # linear_3 (no activation); store lane-dense in o_ref's (possibly bf16) dtype.
    o = (
        jnp.dot(h2.astype(w3_ref.dtype), w3_ref[...],
                preferred_element_type=jnp.float32)
        + b3_ref[...]
    )
    o_ref[...] = o.astype(o_ref.dtype)


def prepare_params(params, *, lane=128, compute_dtype=jnp.bfloat16):
    """One-time prep: transpose PyTorch (out,in) weights to (in,out), cast to bf16,
    zero-pad every output-feature dim up to a multiple of 128 lanes, and reshape
    biases to (1, out_padded) f32.  Padded rows/cols are zero so the math is exact for
    the real features (ReLU(0)=0 propagates zeros through the padded units).  The
    reduction (K) dims are NOT padded further — the kernel is HBM-bound, not MXU-bound.
    """
    d_in = params["w1"].shape[1]
    h1, h2, d_out = params["w1"].shape[0], params["w2"].shape[0], params["w3"].shape[0]
    h1p, h2p, d_outp = _round_up(h1, lane), _round_up(h2, lane), _round_up(d_out, lane)

    def prep(w, b, in_pad, out_pad):
        out_d, in_d = w.shape
        wt = jnp.zeros((in_pad, out_pad), compute_dtype)
        wt = wt.at[:in_d, :out_d].set(w.T.astype(compute_dtype))
        bb = jnp.zeros((1, out_pad), jnp.float32)
        bb = bb.at[:, :out_d].set(b.astype(jnp.float32))
        return wt, bb

    w1t, b1 = prep(params["w1"], params["b1"], d_in, h1p)
    w2t, b2 = prep(params["w2"], params["b2"], h1p, h2p)
    w3t, b3 = prep(params["w3"], params["b3"], h2p, d_outp)
    return {"w1t": w1t, "b1": b1, "w2t": w2t, "b2": b2, "w3t": w3t, "b3": b3}


def _pick_batch_tile(B, target=512):
    """Target ~512-row tiles (~1.6 MB f32 x slab per grid step), halved until the
    'parallel' batch grid has >= 2 steps (both v7x TensorCores busy).  Always a
    multiple of 8 (sublane requirement); a tile larger than B is fine (partial block).
    """
    tile = target
    while tile > 8 and pl.cdiv(B, tile) < 2:
        tile //= 2
    return max(min(tile, _round_up(B, 8)), 8)


def neural_net_forward(x, prepared, *, d_out, batch_tile=None,
                       out_dtype=jnp.bfloat16, slice_output=True,
                       weight_buffer_count=None, vmem_limit_bytes=None):
    """Forward pass of NeuralNet.  x: (B, input_layer) f32 (or bf16).
    Returns (B, d_out) in out_dtype (or the 128-lane-padded (B, d_outp) buffer when
    slice_output=False, saving one extra pass over the output)."""
    B, d_in = x.shape
    h1p = prepared["w1t"].shape[1]
    h2p = prepared["w2t"].shape[1]
    d_outp = prepared["w3t"].shape[1]

    if batch_tile is None:
        batch_tile = _pick_batch_tile(B)
    # Ragged last tile handled by cdiv + partial writeback (rows are independent, and
    # out-of-range rows are never written); no HBM-side padding copy of x.
    grid = (pl.cdiv(B, batch_tile),)

    # Constant-index_map specs: weights/biases are fetched once.  Optionally drop their
    # (pointless) double-buffering when pushing batch_tile toward the VMEM budget
    # (v5e 16 MiB default scoped / v7x 64 MiB per-TC) by passing weight_buffer_count=1.
    def const_spec(shape):
        kwargs = {}
        if weight_buffer_count is not None:
            kwargs["pipeline_mode"] = pl.Buffered(weight_buffer_count)
        return pl.BlockSpec(shape, lambda i: (0, 0), **kwargs)

    # Rough per-step VMEM footprint (double-buffered x/out tiles + weights).  Raise the
    # scoped-VMEM limit only if it approaches v5e's 16 MiB default (v6e/v7x: 32 MiB),
    # staying well under v7x's 64 MiB physical per-TC budget.
    weight_bytes = sum(
        int(prepared[k].size) * prepared[k].dtype.itemsize
        for k in ("w1t", "w2t", "w3t", "b1", "b2", "b3")
    )
    est = (2 * batch_tile * d_in * x.dtype.itemsize
           + 2 * batch_tile * d_outp * jnp.dtype(out_dtype).itemsize
           + 2 * weight_bytes)
    if vmem_limit_bytes is None and est > 12 * 1024 * 1024:
        vmem_limit_bytes = min(int(est * 3 // 2), 48 * 1024 * 1024)

    out = pl.pallas_call(
        mlp_kernel,
        out_shape=jax.ShapeDtypeStruct((B, d_outp), out_dtype),
        grid_spec=pltpu.PrefetchScalarGridSpec(
            num_scalar_prefetch=0,
            grid=grid,
            in_specs=[
                pl.BlockSpec((batch_tile, d_in), lambda i: (i, 0)),  # x tile (f32)
                const_spec((d_in, h1p)),      # w1^T (bf16)
                const_spec((1, h1p)),         # b1   (f32)
                const_spec((h1p, h2p)),       # w2^T (bf16)
                const_spec((1, h2p)),         # b2   (f32)
                const_spec((h2p, d_outp)),    # w3^T (bf16)
                const_spec((1, d_outp)),      # b3   (f32)
            ],
            out_specs=pl.BlockSpec((batch_tile, d_outp), lambda i: (i, 0)),
        ),
        compiler_params=pltpu.CompilerParams(
            dimension_semantics=("parallel",),
            vmem_limit_bytes=vmem_limit_bytes,
        ),
    )(x, prepared["w1t"], prepared["b1"], prepared["w2t"], prepared["b2"],
      prepared["w3t"], prepared["b3"])

    if not slice_output:
        return out                     # (B, d_outp) lane-padded buffer, no extra pass
    return out[:, :d_out]              # (B, d_out)


def init_params(key, input_layer, hidden_1, hidden_2, output):
    """Deterministic synthetic init mimicking nn.Linear's U(-1/sqrt(fan_in), +)."""
    ks = jax.random.split(key, 6)

    def lin(kw, kb, fan_out, fan_in):
        bound = 1.0 / jnp.sqrt(jnp.float32(fan_in))
        w = jax.random.uniform(kw, (fan_out, fan_in), jnp.float32, -bound, bound)
        b = jax.random.uniform(kb, (fan_out,), jnp.float32, -bound, bound)
        return w, b

    w1, b1 = lin(ks[0], ks[1], hidden_1, input_layer)
    w2, b2 = lin(ks[2], ks[3], hidden_2, hidden_1)
    w3, b3 = lin(ks[4], ks[5], output, hidden_2)
    return {"w1": w1, "b1": b1, "w2": w2, "b2": b2, "w3": w3, "b3": b3}


if __name__ == "__main__":
    # MNIST-like MLP shapes: flattened 28x28 image -> 128 -> 64 -> 10 classes.
    # B=300 is deliberately NOT a multiple of the auto-picked tile (256 here), so the
    # ragged-last-tile path (cdiv grid + partial writeback) is exercised while keeping
    # a 2-step "parallel" grid for v7x's two TensorCores.
    B, INPUT, H1, H2, OUT = 300, 784, 128, 64, 10

    key = jax.random.PRNGKey(0)
    kx, kp = jax.random.split(key)
    x = jax.random.normal(kx, (B, INPUT), jnp.float32)
    params = init_params(kp, INPUT, H1, H2, OUT)

    # One-time weight prep (transpose + 128-lane pad + bf16 cast), off the per-call path.
    prepared = prepare_params(params)

    fwd = jax.jit(functools.partial(neural_net_forward, d_out=OUT))
    out = jax.block_until_ready(fwd(x, prepared))

    # Pure-JAX f32 reference of the same forward pass.
    ref = x
    ref = jnp.maximum(ref @ params["w1"].T + params["b1"], 0.0)
    ref = jnp.maximum(ref @ params["w2"].T + params["b2"], 0.0)
    ref = ref @ params["w3"].T + params["b3"]

    assert out.shape == (B, OUT), out.shape
    assert out.dtype == jnp.bfloat16, out.dtype
    # bf16 matmul inputs + bf16 output store with f32 accumulation -> ~1e-2 agreement.
    err = float(jnp.max(jnp.abs(out.astype(jnp.float32) - ref)))
    assert jnp.allclose(out.astype(jnp.float32), ref, atol=5e-2, rtol=5e-2), err

    print("KERNEL_OK")
</pallas_src>

<mosaic_0001>
module attributes {stable_mosaic.version = 11 : i64} {
  func.func @mlp_kernel(%arg0: i32, %arg1: memref<256x784xf32, #tpu.memory_space<vmem>>, %arg2: memref<784x128xbf16, #tpu.memory_space<vmem>>, %arg3: memref<1x128xf32, #tpu.memory_space<vmem>>, %arg4: memref<128x128xbf16, #tpu.memory_space<vmem>>, %arg5: memref<1x128xf32, #tpu.memory_space<vmem>>, %arg6: memref<128x128xbf16, #tpu.memory_space<vmem>>, %arg7: memref<1x128xf32, #tpu.memory_space<vmem>>, %arg8: memref<256x128xbf16, #tpu.memory_space<vmem>>) attributes {dimension_semantics = [#tpu.dimension_semantics<parallel>], iteration_bounds = array<i64: 2>, scalar_prefetch = 0 : i64, scratch_operands = 0 : i64, tpu.core_type = #tpu.core_type<tc>, window_params = [{transform_indices = @transform_0, window_bounds = array<i64: 256, 784>}, {pipeline_mode = #tpu.pipeline_mode<synchronous>, transform_indices = @transform_1, window_bounds = array<i64: 784, 128>}, {pipeline_mode = #tpu.pipeline_mode<synchronous>, transform_indices = @transform_2, window_bounds = array<i64: 1, 128>}, {pipeline_mode = #tpu.pipeline_mode<synchronous>, transform_indices = @transform_3, window_bounds = array<i64: 128, 128>}, {pipeline_mode = #tpu.pipeline_mode<synchronous>, transform_indices = @transform_4, window_bounds = array<i64: 1, 128>}, {pipeline_mode = #tpu.pipeline_mode<synchronous>, transform_indices = @transform_5, window_bounds = array<i64: 128, 128>}, {pipeline_mode = #tpu.pipeline_mode<synchronous>, transform_indices = @transform_6, window_bounds = array<i64: 1, 128>}, {transform_indices = @transform_7, window_bounds = array<i64: 256, 128>}]} {
    %c0 = arith.constant 0 : index
    %c0_0 = arith.constant 0 : index
    %0 = vector.load %arg1[%c0, %c0_0] : memref<256x784xf32, #tpu.memory_space<vmem>>, vector<256x784xf32>
    %1 = arith.truncf %0 : vector<256x784xf32> to vector<256x784xbf16>
    %c0_1 = arith.constant 0 : index
    %c0_2 = arith.constant 0 : index
    %2 = vector.load %arg2[%c0_1, %c0_2] : memref<784x128xbf16, #tpu.memory_space<vmem>>, vector<784x128xbf16>
    %cst = arith.constant dense<0.000000e+00> : vector<256x128xf32>
    %3 = tpu.matmul %1, %2, %cst {dimension_numbers = #tpu.dot_dimension_numbers<[1], [0], [0], [1], [0, 0, 1, 1], [], []>} : vector<256x784xbf16>, vector<784x128xbf16>, vector<256x128xf32> -> vector<256x128xf32>
    %c0_3 = arith.constant 0 : index
    %c0_4 = arith.constant 0 : index
    %4 = vector.load %arg3[%c0_3, %c0_4] : memref<1x128xf32, #tpu.memory_space<vmem>>, vector<1x128xf32>
    %5 = vector.broadcast %4 : vector<1x128xf32> to vector<256x128xf32>
    %6 = arith.addf %3, %5 : vector<256x128xf32>
    %cst_5 = arith.constant 0.000000e+00 : f32
    %7 = vector.broadcast %cst_5 : f32 to vector<256x128xf32>
    %8 = arith.maximumf %6, %7 : vector<256x128xf32>
    %9 = arith.truncf %8 : vector<256x128xf32> to vector<256x128xbf16>
    %c0_6 = arith.constant 0 : index
    %c0_7 = arith.constant 0 : index
    %10 = vector.load %arg4[%c0_6, %c0_7] : memref<128x128xbf16, #tpu.memory_space<vmem>>, vector<128x128xbf16>
    %cst_8 = arith.constant dense<0.000000e+00> : vector<256x128xf32>
    %11 = tpu.matmul %9, %10, %cst_8 {dimension_numbers = #tpu.dot_dimension_numbers<[1], [0], [0], [1], [0, 0, 1, 1], [], []>} : vector<256x128xbf16>, vector<128x128xbf16>, vector<256x128xf32> -> vector<256x128xf32>
    %c0_9 = arith.constant 0 : index
    %c0_10 = arith.constant 0 : index
    %12 = vector.load %arg5[%c0_9, %c0_10] : memref<1x128xf32, #tpu.memory_space<vmem>>, vector<1x128xf32>
    %13 = vector.broadcast %12 : vector<1x128xf32> to vector<256x128xf32>
    %14 = arith.addf %11, %13 : vector<256x128xf32>
    %cst_11 = arith.constant 0.000000e+00 : f32
    %15 = vector.broadcast %cst_11 : f32 to vector<256x128xf32>
    %16 = arith.maximumf %14, %15 : vector<256x128xf32>
    %17 = arith.truncf %16 : vector<256x128xf32> to vector<256x128xbf16>
    %c0_12 = arith.constant 0 : index
    %c0_13 = arith.constant 0 : index
    %18 = vector.load %arg6[%c0_12, %c0_13] : memref<128x128xbf16, #tpu.memory_space<vmem>>, vector<128x128xbf16>
    %cst_14 = arith.constant dense<0.000000e+00> : vector<256x128xf32>
    %19 = tpu.matmul %17, %18, %cst_14 {dimension_numbers = #tpu.dot_dimension_numbers<[1], [0], [0], [1], [0, 0, 1, 1], [], []>} : vector<256x128xbf16>, vector<128x128xbf16>, vector<256x128xf32> -> vector<256x128xf32>
    %c0_15 = arith.constant 0 : index
    %c0_16 = arith.constant 0 : index
    %20 = vector.load %arg7[%c0_15, %c0_16] : memref<1x128xf32, #tpu.memory_space<vmem>>, vector<1x128xf32>
    %21 = vector.broadcast %20 : vector<1x128xf32> to vector<256x128xf32>
    %22 = arith.addf %19, %21 : vector<256x128xf32>
    %23 = arith.truncf %22 : vector<256x128xf32> to vector<256x128xbf16>
    %c0_17 = arith.constant 0 : index
    %c0_18 = arith.constant 0 : index
    %24 = vector.load %arg8[%c0_17, %c0_18] : memref<256x128xbf16, #tpu.memory_space<vmem>>, vector<256x128xbf16>
    tpu.vector_store %arg8[%c0_17, %c0_18], %23 {strides = array<i32>} : memref<256x128xbf16, #tpu.memory_space<vmem>>, vector<256x128xbf16>,
    return
  }
  func.func @transform_0(%arg0: i32) -> (i32, i32) {
    %c0_i32 = arith.constant 0 : i32
    %c0_i32_0 = arith.constant 0 : i32
    return %arg0, %c0_i32 : i32, i32
  }
  func.func @transform_1(%arg0: i32) -> (i32, i32) {
    %c0_i32 = arith.constant 0 : i32
    %c0_i32_0 = arith.constant 0 : i32
    %c0_i32_1 = arith.constant 0 : i32
    return %c0_i32, %c0_i32_0 : i32, i32
  }
  func.func @transform_2(%arg0: i32) -> (i32, i32) {
    %c0_i32 = arith.constant 0 : i32
    %c0_i32_0 = arith.constant 0 : i32
    %c0_i32_1 = arith.constant 0 : i32
    return %c0_i32, %c0_i32_0 : i32, i32
  }
  func.func @transform_3(%arg0: i32) -> (i32, i32) {
    %c0_i32 = arith.constant 0 : i32
    %c0_i32_0 = arith.constant 0 : i32
    %c0_i32_1 = arith.constant 0 : i32
    return %c0_i32, %c0_i32_0 : i32, i32
  }
  func.func @transform_4(%arg0: i32) -> (i32, i32) {
    %c0_i32 = arith.constant 0 : i32
    %c0_i32_0 = arith.constant 0 : i32
    %c0_i32_1 = arith.constant 0 : i32
    return %c0_i32, %c0_i32_0 : i32, i32
  }
  func.func @transform_5(%arg0: i32) -> (i32, i32) {
    %c0_i32 = arith.constant 0 : i32
    %c0_i32_0 = arith.constant 0 : i32
    %c0_i32_1 = arith.constant 0 : i32
    return %c0_i32, %c0_i32_0 : i32, i32
  }
  func.func @transform_6(%arg0: i32) -> (i32, i32) {
    %c0_i32 = arith.constant 0 : i32
    %c0_i32_0 = arith.constant 0 : i32
    %c0_i32_1 = arith.constant 0 : i32
    return %c0_i32, %c0_i32_0 : i32, i32
  }
  func.func @transform_7(%arg0: i32) -> (i32, i32) {
    %c0_i32 = arith.constant 0 : i32
    %c0_i32_0 = arith.constant 0 : i32
    return %arg0, %c0_i32 : i32, i32
  }
}

</mosaic_0001>

<llo_original>
// kernel: neural_net_forward.1
$region0: #{neural_net_forward.1}
  #allocation0 [shape = 'u32[]', space=smem, size = 0x4, offset = 0x4, fixed_abs, tag = 'smem constant byte address 0x4 - core index']
  #allocation1 [shape = 'u32[72,128]{1,0:T(1,128)}', space=vmem, size = 0x9000, scoped, tag = 'internal scratch']
  %s0 = inlined_call_operand.hbm [shape: f32[300,784], index: 0, kind: input, shape index: {}]
  %s1 = inlined_call_operand.hbm [shape: bf16[784,128], index: 1, kind: input, shape index: {}]
  %s2 = inlined_call_operand.hbm [shape: f32[1,128], index: 2, kind: input, shape index: {}]
  %s3 = inlined_call_operand.hbm [shape: bf16[128,128], index: 3, kind: input, shape index: {}]
  %s4 = inlined_call_operand.hbm [shape: f32[1,128], index: 4, kind: input, shape index: {}]
  %s5 = inlined_call_operand.hbm [shape: bf16[128,128], index: 5, kind: input, shape index: {}]
  %s6 = inlined_call_operand.hbm [shape: f32[1,128], index: 6, kind: input, shape index: {}]
  %s7 = inlined_call_operand.vmem [shape: bf16[300,128], index: 7, kind: output, shape index: {}]
  %s8 = sld [smem:[#allocation0]]
  $region133: #{neural_net_forward.1} parent=0
    _
  %s10 = ssub.s32 1, %s8
  %s11 = scalar_select 0, %s10, %s8
  $region1: #{neural_net_forward.1} parent=0
    #allocation2 [shape = 'u8[1835008]{0}', space=vmem, size = 0x1c0000, scoped, tag = 'input window, operand 0']
    #allocation3 [shape = 's32[2]{0}', space=sflag, size = 0x8, scoped, tag = 'scoped memory for neural_net_forward.1']
    #allocation4 [shape = 'u8[200704]{0}', space=vmem, size = 0x31000, scoped, tag = 'input window, operand 1, single buffered']
    #allocation5 [shape = 's32[1]{0}', space=sflag, size = 0x4, scoped, tag = 'scoped memory for neural_net_forward.1']
    #allocation6 [shape = 'u8[512]{0}', space=vmem, size = 0x400, scoped, tag = 'input window, operand 2, single buffered']
    #allocation7 [shape = 'u8[32768]{0}', space=vmem, size = 0x8000, scoped, tag = 'input window, operand 3, single buffered']
    #allocation8 [shape = 's32[1]{0}', space=sflag, size = 0x4, scoped, tag = 'scoped memory for neural_net_forward.1']
    #allocation9 [shape = 'u8[512]{0}', space=vmem, size = 0x400, scoped, tag = 'input window, operand 4, single buffered']
    #allocation10 [shape = 'u8[32768]{0}', space=vmem, size = 0x8000, scoped, tag = 'input window, operand 5, single buffered']
    #allocation11 [shape = 's32[1]{0}', space=sflag, size = 0x4, scoped, tag = 'scoped memory for neural_net_forward.1']
    #allocation12 [shape = 'u8[512]{0}', space=vmem, size = 0x400, scoped, tag = 'input window, operand 6, single buffered']
    #allocation13 [shape = 'u8[131072]{0}', space=vmem, size = 0x20000, scoped, tag = 'output window, operand 0']
    %12 = vsyncpa [#allocation3], 0
    %s13 = scalar_lea.sflag [#allocation3], 1
    %14 = vsyncpa %s13, 0
    %15 = vsyncpa [#allocation5], 0
    %16 = vsyncpa [#allocation8], 0
    %17 = vsyncpa [#allocation11], 0
    loop: start=0, step=1, limit=4
    $region2: #{neural_net_forward.1} parent=1 // loop_pre_header
      _
    $region3: #{neural_net_forward.1} parent=1 // loop_header
      %s19 = sphi 0, %s23
      %p20 = scmp.ge.s32.totalorder %s19, 4
      %s29 = sphi 0, %s31
      %s32 = sphi 0, %s29
      %s33 = sphi 0, %s32
      %s49 = sphi 0, %s33
      %s53 = sphi 0, %s53
      %s55 = sphi 0, %s53
      %s56 = sphi 0, %s55
      %s70 = sphi 0, %s56
      %s74 = sphi 0, %s74
      %s76 = sphi 0, %s74
      %s77 = sphi 0, %s76
      %s91 = sphi 0, %s77
      %s95 = sphi 0, %s95
      %s97 = sphi 0, %s95
      %s98 = sphi 0, %s97
      %s112 = sphi 0, %s98
      %s116 = sphi 0, %s116
      %s118 = sphi 0, %s116
      %s119 = sphi 0, %s118
      %s133 = sphi 0, %s119
      %s137 = sphi 0, %s137
      %s139 = sphi 0, %s137
      %s140 = sphi 0, %s139
      %s154 = sphi 0, %s140
      %s158 = sphi 0, %s158
      %s160 = sphi 0, %s158
      %s161 = sphi 0, %s160
      %s175 = sphi 0, %s161
      %s181 = sphi 0, %s183
      %s184 = sphi 0, %s181
      %s185 = sphi 0, %s184
      %s201 = sphi 0, %s185
    $region4: #{neural_net_forward.1} parent=1 // loop_header_branch
      %22 = sbr.rel (%p20) target = $region8
    $region5: #{neural_net_forward.1} parent=1 // loop_body
      %s24 = ssub.s32 %s19, 1
      %s25 = ssub.s32 %s19, 2
      %s26 = sadd.s32 %s19, 1
      %s27 = ssub.s32 %s19, %s26
      %p28 = scmp.eq.s32.totalorder %s27, 0
      %s30 = sadd.s32 %s29, 1
      %s31 = scalar_select %p28, %s29, %s30
      %p34 = pneg %p28
      %p35 = scmp.eq.s32.totalorder %s19, 1
      %p36 = por %p34, %p35
      %p37 = scmp.ne.s32.totalorder %s29, %s32
      %p38 = scmp.eq.s32.totalorder %s19, 0
      %p39 = por %p37, %p38
      %p40 = scmp.ne.s32.totalorder %s29, %s32
      %p41 = scmp.eq.s32.totalorder %s24, 1
      %p42 = por %p40, %p41
      %p43 = scmp.ne.s32.totalorder %s32, %s33
      %p44 = scmp.eq.s32.totalorder %s24, 0
      %p45 = por %p43, %p44
      %p46 = scmp.ne.s32.totalorder %s32, %s33
      %p47 = scmp.eq.s32.totalorder %s25, 1
      %p48 = por %p46, %p47
      %p50 = scmp.ne.s32.totalorder %s33, %s49
      %p51 = scmp.eq.s32.totalorder %s25, 0
      %p52 = por %p50, %p51
      %s54 = sadd.s32 %s53, 1
      %p57 = scmp.eq.s32.totalorder %s19, 1
      %p58 = scmp.ne.s32.totalorder %s53, %s55
      %p59 = scmp.eq.s32.totalorder %s19, 0
      %p60 = por %p58, %p59
      %p61 = scmp.ne.s32.totalorder %s53, %s55
      %p62 = scmp.eq.s32.totalorder %s24, 1
      %p63 = por %p61, %p62
      %p64 = scmp.ne.s32.totalorder %s55, %s56
      %p65 = scmp.eq.s32.totalorder %s24, 0
      %p66 = por %p64, %p65
      %p67 = scmp.ne.s32.totalorder %s55, %s56
      %p68 = scmp.eq.s32.totalorder %s25, 1
      %p69 = por %p67, %p68
      %p71 = scmp.ne.s32.totalorder %s56, %s70
      %p72 = scmp.eq.s32.totalorder %s25, 0
      %p73 = por %p71, %p72
      %s75 = sadd.s32 %s74, 1
      %p78 = scmp.eq.s32.totalorder %s19, 1
      %p79 = scmp.ne.s32.totalorder %s74, %s76
      %p80 = scmp.eq.s32.totalorder %s19, 0
      %p81 = por %p79, %p80
      %p82 = scmp.ne.s32.totalorder %s74, %s76
      %p83 = scmp.eq.s32.totalorder %s24, 1
      %p84 = por %p82, %p83
      %p85 = scmp.ne.s32.totalorder %s76, %s77
      %p86 = scmp.eq.s32.totalorder %s24, 0
      %p87 = por %p85, %p86
      %p88 = scmp.ne.s32.totalorder %s76, %s77
      %p89 = scmp.eq.s32.totalorder %s25, 1
      %p90 = por %p88, %p89
      %p92 = scmp.ne.s32.totalorder %s77, %s91
      %p93 = scmp.eq.s32.totalorder %s25, 0
      %p94 = por %p92, %p93
      %s96 = sadd.s32 %s95, 1
      %p99 = scmp.eq.s32.totalorder %s19, 1
      %p100 = scmp.ne.s32.totalorder %s95, %s97
      %p101 = scmp.eq.s32.totalorder %s19, 0
      %p102 = por %p100, %p101
      %p103 = scmp.ne.s32.totalorder %s95, %s97
      %p104 = scmp.eq.s32.totalorder %s24, 1
      %p105 = por %p103, %p104
      %p106 = scmp.ne.s32.totalorder %s97, %s98
      %p107 = scmp.eq.s32.totalorder %s24, 0
      %p108 = por %p106, %p107
      %p109 = scmp.ne.s32.totalorder %s97, %s98
      %p110 = scmp.eq.s32.totalorder %s25, 1
      %p111 = por %p109, %p110
      %p113 = scmp.ne.s32.totalorder %s98, %s112
      %p114 = scmp.eq.s32.totalorder %s25, 0
      %p115 = por %p113, %p114
      %s117 = sadd.s32 %s116, 1
      %p120 = scmp.eq.s32.totalorder %s19, 1
      %p121 = scmp.ne.s32.totalorder %s116, %s118
      %p122 = scmp.eq.s32.totalorder %s19, 0
      %p123 = por %p121, %p122
      %p124 = scmp.ne.s32.totalorder %s116, %s118
      %p125 = scmp.eq.s32.totalorder %s24, 1
      %p126 = por %p124, %p125
      %p127 = scmp.ne.s32.totalorder %s118, %s119
      %p128 = scmp.eq.s32.totalorder %s24, 0
      %p129 = por %p127, %p128
      %p130 = scmp.ne.s32.totalorder %s118, %s119
      %p131 = scmp.eq.s32.totalorder %s25, 1
      %p132 = por %p130, %p131
      %p134 = scmp.ne.s32.totalorder %s119, %s133
      %p135 = scmp.eq.s32.totalorder %s25, 0
      %p136 = por %p134, %p135
      %s138 = sadd.s32 %s137, 1
      %p141 = scmp.eq.s32.totalorder %s19, 1
      %p142 = scmp.ne.s32.totalorder %s137, %s139
      %p143 = scmp.eq.s32.totalorder %s19, 0
      %p144 = por %p142, %p143
      %p145 = scmp.ne.s32.totalorder %s137, %s139
      %p146 = scmp.eq.s32.totalorder %s24, 1
      %p147 = por %p145, %p146
      %p148 = scmp.ne.s32.totalorder %s139, %s140
      %p149 = scmp.eq.s32.totalorder %s24, 0
      %p150 = por %p148, %p149
      %p151 = scmp.ne.s32.totalorder %s139, %s140
      %p152 = scmp.eq.s32.totalorder %s25, 1
      %p153 = por %p151, %p152
      %p155 = scmp.ne.s32.totalorder %s140, %s154
      %p156 = scmp.eq.s32.totalorder %s25, 0
      %p157 = por %p155, %p156
      %s159 = sadd.s32 %s158, 1
      %p162 = scmp.eq.s32.totalorder %s19, 1
      %p163 = scmp.ne.s32.totalorder %s158, %s160
      %p164 = scmp.eq.s32.totalorder %s19, 0
      %p165 = por %p163, %p164
      %p166 = scmp.ne.s32.totalorder %s158, %s160
      %p167 = scmp.eq.s32.totalorder %s24, 1
      %p168 = por %p166, %p167
      %p169 = scmp.ne.s32.totalorder %s160, %s161
      %p170 = scmp.eq.s32.totalorder %s24, 0
      %p171 = por %p169, %p170
      %p172 = scmp.ne.s32.totalorder %s160, %s161
      %p173 = scmp.eq.s32.totalorder %s25, 1
      %p174 = por %p172, %p173
      %p176 = scmp.ne.s32.totalorder %s161, %s175
      %p177 = scmp.eq.s32.totalorder %s25, 0
      %p178 = por %p176, %p177
      %s179 = ssub.s32 %s19, %s26
      %p180 = scmp.eq.s32.totalorder %s179, 0
      %s182 = sadd.s32 %s181, 1
      %s183 = scalar_select %p180, %s181, %s182
      %p186 = pneg %p180
      %p187 = scmp.eq.s32.totalorder %s19, 1
      %p188 = por %p186, %p187
      %p189 = scmp.ne.s32.totalorder %s181, %s184
      %p190 = scmp.eq.s32.totalorder %s19, 0
      %p191 = por %p189, %p190
      %p192 = scmp.ne.s32.totalorder %s181, %s184
      %p193 = scmp.eq.s32.totalorder %s24, 1
      %p194 = por %p192, %p193
      %p195 = scmp.ne.s32.totalorder %s184, %s185
      %p196 = scmp.eq.s32.totalorder %s24, 0
      %p197 = por %p195, %p196
      %p198 = scmp.ne.s32.totalorder %s184, %s185
      %p199 = scmp.eq.s32.totalorder %s25, 1
      %p200 = por %p198, %p199
      %p202 = scmp.ne.s32.totalorder %s185, %s201
      %p203 = scmp.eq.s32.totalorder %s25, 0
      %p204 = por %p202, %p203
      %p205 = scmp.le.s32.totalorder 1, %s19
      %p206 = scmp.lt.s32.totalorder %s19, 3
      %p207 = pnand %p205, %p206
      %p208 = pneg %p207
      // Predicated region
      $region9: #{neural_net_forward.1} parent=5 // pred_check
        _
      $region10: #{neural_net_forward.1} parent=5 // pred_check_branch
        %210 = sbr.rel (%p207) target = $region12
      $region11: #{neural_net_forward.1} parent=5 // pred_region
        %s211 = ssub.s32 %s19, 1
        // Predicated region
        $region13: #{neural_net_forward.1} parent=11 // pred_check
          %p212 = pneg %p66
        $region14: #{neural_net_forward.1} parent=11 // pred_check_branch
          %214 = sbr.rel (%p212) target = $region16
        $region15: #{neural_net_forward.1} parent=11 // pred_region
          %216 = vsyncadd [#allocation5], 0
          %s217 = sshll.u32 %s1, 4
          %s218 = int_to_ptr.hbm [resolvable:$true] %s217
          %s219 = sshll.u32 [#allocation4], 4
          %s220 = int_to_ptr.vmem [resolvable:$true] %s219
          %225 = dma.hbm_to_vmem [thread:$0]  %s218, 6272, %s220, [#allocation5], 64, 64, 4
        $region16: #{neural_net_forward.1} parent=11 // pred_fallthru
          _
        // Predicated region
        $region17: #{neural_net_forward.1} parent=11 // pred_check
          %p226 = pneg %p87
        $region18: #{neural_net_forward.1} parent=11 // pred_check_branch
          %228 = sbr.rel (%p226) target = $region20
        $region19: #{neural_net_forward.1} parent=11 // pred_region
          %230 = vsyncadd [#allocation5], 0
          %s232 = sshll.u32 %s2, 4
          %s233 = int_to_ptr.hbm [resolvable:$true] %s232
          %s234 = sshll.u32 [#allocation6], 4
          %s235 = int_to_ptr.vmem [resolvable:$true] %s234
          %237 = dma.hbm_to_vmem [thread:$0]  %s233, 16, %s235, [#allocation5]
        $region20: #{neural_net_forward.1} parent=11 // pred_fallthru
          _
        // Predicated region
        $region21: #{neural_net_forward.1} parent=11 // pred_check
          %p238 = pneg %p108
        $region22: #{neural_net_forward.1} parent=11 // pred_check_branch
          %240 = sbr.rel (%p238) target = $region24
        $region23: #{neural_net_forward.1} parent=11 // pred_region
          %242 = vsyncadd [#allocation8], 0
          %s243 = sshll.u32 %s3, 4
          %s244 = int_to_ptr.hbm [resolvable:$true] %s243
          %s245 = sshll.u32 [#allocation7], 4
          %s246 = int_to_ptr.vmem [resolvable:$true] %s245
          %251 = dma.hbm_to_vmem [thread:$0]  %s244, 1024, %s246, [#allocation8], 64, 64, 4
        $region24: #{neural_net_forward.1} parent=11 // pred_fallthru
          _
        // Predicated region
        $region25: #{neural_net_forward.1} parent=11 // pred_check
          %p252 = pneg %p129
        $region26: #{neural_net_forward.1} parent=11 // pred_check_branch
          %254 = sbr.rel (%p252) target = $region28
        $region27: #{neural_net_forward.1} parent=11 // pred_region
          %256 = vsyncadd [#allocation8], 0
          %s258 = sshll.u32 %s4, 4
          %s259 = int_to_ptr.hbm [resolvable:$true] %s258
          %s260 = sshll.u32 [#allocation9], 4
          %s261 = int_to_ptr.vmem [resolvable:$true] %s260
          %263 = dma.hbm_to_vmem [thread:$0]  %s259, 16, %s261, [#allocation8]
        $region28: #{neural_net_forward.1} parent=11 // pred_fallthru
          _
        // Predicated region
        $region29: #{neural_net_forward.1} parent=11 // pred_check
          %p264 = pneg %p150
        $region30: #{neural_net_forward.1} parent=11 // pred_check_branch
          %266 = sbr.rel (%p264) target = $region32
        $region31: #{neural_net_forward.1} parent=11 // pred_region
          %268 = vsyncadd [#allocation11], 0
          %s269 = sshll.u32 %s5, 4
          %s270 = int_to_ptr.hbm [resolvable:$true] %s269
          %s271 = sshll.u32 [#allocation10], 4
          %s272 = int_to_ptr.vmem [resolvable:$true] %s271
          %277 = dma.hbm_to_vmem [thread:$0]  %s270, 1024, %s272, [#allocation11], 64, 64, 4
        $region32: #{neural_net_forward.1} parent=11 // pred_fallthru
          _
        // Predicated region
        $region33: #{neural_net_forward.1} parent=11 // pred_check
          %p278 = pneg %p171
        $region34: #{neural_net_forward.1} parent=11 // pred_check_branch
          %280 = sbr.rel (%p278) target = $region36
        $region35: #{neural_net_forward.1} parent=11 // pred_region
          %282 = vsyncadd [#allocation11], 0
          %s284 = sshll.u32 %s6, 4
          %s285 = int_to_ptr.hbm [resolvable:$true] %s284
          %s286 = sshll.u32 [#allocation12], 4
          %s287 = int_to_ptr.vmem [resolvable:$true] %s286
          %289 = dma.hbm_to_vmem [thread:$0]  %s285, 16, %s287, [#allocation11]
        $region36: #{neural_net_forward.1} parent=11 // pred_fallthru
          _
      $region12: #{neural_net_forward.1} parent=5 // pred_fallthru
        _
      %p290 = scmp.lt.s32.totalorder %s19, 2
      // Predicated region
      $region37: #{neural_net_forward.1} parent=5 // pred_check
        %p291 = pneg %p290
      $region38: #{neural_net_forward.1} parent=5 // pred_check_branch
        %293 = sbr.rel (%p291) target = $region40
      $region39: #{neural_net_forward.1} parent=5 // pred_region
        // Predicated region
        $region41: #{neural_net_forward.1} parent=39 // pred_check
          %p294 = pneg %p39
        $region42: #{neural_net_forward.1} parent=39 // pred_check_branch
          %296 = sbr.rel (%p294) target = $region44
        $region43: #{neural_net_forward.1} parent=39 // pred_region
          %s297 = sand.u32 %s29, 1
          %s298 = scalar_lea.sflag [#allocation3], %s297
          %s299 = sand.u32 %s29, 1
          %s300 = smul.addr %s299, 1792
          %s301 = scalar_lea.vmem [#allocation2], %s300
          %s302 = smul.u32 32, %s19
          %s303 = ssub.s32 38, %s302
          %p304 = scmp.lt.s32.totalorder %s303, 32
          %s305 = scalar_select %p304, %s303, 32
          %s306 = smul.u32 8, %s305
          %s307 = smul.u32 %s306, 7
          %s308 = ssub.s32 1792, %s307
          %s309 = sshll.u32 %s308, 4
          %310 = vsyncadd %s298, %s309
          %p311 = scmp.ne.s32.totalorder 0, %s307
          %s312 = smul.addr %s302, 7
          %s313 = smul.addr %s312, 8
          %s314 = scalar_lea.hbm %s0, %s313
          %s315 = smul.u32 56, %s305
          %s316 = sshll.u32 %s314, 4
          %s317 = int_to_ptr.hbm [resolvable:$true] %s316
          %s318 = sshll.u32 %s301, 4
          %s319 = int_to_ptr.vmem [resolvable:$true] %s318
          %s320 = sshll.u32 %s315, 4
          %324 = dma.hbm_to_vmem [thread:$0]  (%p311), %s317, %s320, %s319, %s298, 896, 896, 56
        $region44: #{neural_net_forward.1} parent=39 // pred_fallthru
          _
      $region40: #{neural_net_forward.1} parent=5 // pred_fallthru
        _
      %p325 = scmp.le.s32.totalorder 1, %s19
      %p326 = scmp.lt.s32.totalorder %s19, 3
      %p327 = pnand %p325, %p326
      %p328 = pneg %p327
      // Predicated region
      $region45: #{neural_net_forward.1} parent=5 // pred_check
        _
      $region46: #{neural_net_forward.1} parent=5 // pred_check_branch
        %330 = sbr.rel (%p327) target = $region48
      $region47: #{neural_net_forward.1} parent=5 // pred_region
        %s331 = ssub.s32 %s19, 1
        %s332 = sand.u32 %s32, 1
        %s333 = scalar_lea.sflag [#allocation3], %s332
        %s334 = sand.u32 %s32, 1
        %s335 = smul.addr %s334, 1792
        %s336 = scalar_lea.vmem [#allocation2], %s335
        // Predicated region
        $region49: #{neural_net_forward.1} parent=47 // pred_check
          %p337 = pneg %p45
        $region50: #{neural_net_forward.1} parent=47 // pred_check_branch
          %339 = sbr.rel (%p337) target = $region52
        $region51: #{neural_net_forward.1} parent=47 // pred_region
          %341 = dma.done %s333, 28672
        $region52: #{neural_net_forward.1} parent=47 // pred_fallthru
          _
        // Predicated region
        $region53: #{neural_net_forward.1} parent=47 // pred_check
          %p342 = pneg %p66
        $region54: #{neural_net_forward.1} parent=47 // pred_check_branch
          %344 = sbr.rel (%p342) target = $region56
        $region55: #{neural_net_forward.1} parent=47 // pred_region
          %346 = dma.done [#allocation5], 6272
        $region56: #{neural_net_forward.1} parent=47 // pred_fallthru
          _
        // Predicated region
        $region57: #{neural_net_forward.1} parent=47 // pred_check
          %p347 = pneg %p87
        $region58: #{neural_net_forward.1} parent=47 // pred_check_branch
          %349 = sbr.rel (%p347) target = $region60
        $region59: #{neural_net_forward.1} parent=47 // pred_region
          %351 = dma.done [#allocation5], 16
        $region60: #{neural_net_forward.1} parent=47 // pred_fallthru
          _
        // Predicated region
        $region61: #{neural_net_forward.1} parent=47 // pred_check
          %p352 = pneg %p108
        $region62: #{neural_net_forward.1} parent=47 // pred_check_branch
          %354 = sbr.rel (%p352) target = $region64
        $region63: #{neural_net_forward.1} parent=47 // pred_region
          %356 = dma.done [#allocation8], 1024
        $region64: #{neural_net_forward.1} parent=47 // pred_fallthru
          _
        // Predicated region
        $region65: #{neural_net_forward.1} parent=47 // pred_check
          %p357 = pneg %p129
        $region66: #{neural_net_forward.1} parent=47 // pred_check_branch
          %359 = sbr.rel (%p357) target = $region68
        $region67: #{neural_net_forward.1} parent=47 // pred_region
          %361 = dma.done [#allocation8], 16
        $region68: #{neural_net_forward.1} parent=47 // pred_fallthru
          _
        // Predicated region
        $region69: #{neural_net_forward.1} parent=47 // pred_check
          %p362 = pneg %p150
        $region70: #{neural_net_forward.1} parent=47 // pred_check_branch
          %364 = sbr.rel (%p362) target = $region72
        $region71: #{neural_net_forward.1} parent=47 // pred_region
          %366 = dma.done [#allocation11], 1024
        $region72: #{neural_net_forward.1} parent=47 // pred_fallthru
          _
        // Predicated region
        $region73: #{neural_net_forward.1} parent=47 // pred_check
          %p367 = pneg %p171
        $region74: #{neural_net_forward.1} parent=47 // pred_check_branch
          %369 = sbr.rel (%p367) target = $region76
        $region75: #{neural_net_forward.1} parent=47 // pred_region
          %371 = dma.done [#allocation11], 16
        $region76: #{neural_net_forward.1} parent=47 // pred_fallthru
          _
        %s372 = sand.u32 %s32, 1
        %s373 = scalar_lea.sflag [#allocation3], %s372
        %s374 = sand.u32 %s32, 1
        %s375 = smul.addr %s374, 1792
        %s376 = scalar_lea.vmem [#allocation2], %s375
        %p377 = pneg %p45
        %p378 = pneg %p42
        %p379 = pneg %p66
        %p380 = pneg %p63
        %p381 = pneg %p87
        %p382 = pneg %p84
        %p383 = pneg %p108
        %p384 = pneg %p105
        %p385 = pneg %p129
        %p386 = pneg %p126
        %p387 = pneg %p150
        %p388 = pneg %p147
        %p389 = pneg %p171
        %p390 = pneg %p168
        %p391 = pneg %p197
        %p392 = pneg %p194
        %s393 = sand.u32 %s184, 1
        %s394 = sand.u32 %s184, 1
        %s395 = smul.addr %s394, 128
        %s396 = scalar_lea.vmem [#allocation13], %s395
        %s397 = smul.u32 32, %s24
        %s398 = ssub.s32 38, %s397
        %p399 = scmp.lt.s32.totalorder %s398, 32
        %s400 = scalar_select %p399, %s398, 32
        %s401 = smul.u32 8, %s400
        %s402 = smul.u32 %s401, 7
        %s403 = smul.u32 32, %s24
        %s404 = ssub.s32 38, %s403
        %p405 = scmp.lt.s32.totalorder %s404, 32
        %s406 = scalar_select %p405, %s404, 32
        %s407 = smul.u32 4, %s406
        %v409 = vld [vmem:[%s336] sm:$0xff]
        %v410 = vld [vmem:[%s336 + $0x8] sm:$0xff]
        %v411 = vld [vmem:[%s336 + $0x10] sm:$0xff]
        %v412 = vld [vmem:[%s336 + $0x18] sm:$0xff]
        %v413 = vld [vmem:[%s336 + $0x20] sm:$0xff]
        %v414 = vld [vmem:[%s336 + $0x28] sm:$0xff]
        %v415 = vld [vmem:[%s336 + $0x30] sm:$0xff]
        %v416 = vld [vmem:[%s336 + $0x38] sm:$0xff]
        %v417 = vld [vmem:[%s336 + $0x40] sm:$0xff]
        %v418 = vld [vmem:[%s336 + $0x48] sm:$0xff]
        %v419 = vld [vmem:[%s336 + $0x50] sm:$0xff]
        %v420 = vld [vmem:[%s336 + $0x58] sm:$0xff]
        %v421 = vld [vmem:[%s336 + $0x60] sm:$0xff]
        %v422 = vld [vmem:[%s336 + $0x68] sm:$0xff]
        %v423 = vld [vmem:[%s336 + $0x70] sm:$0xff]
        %v424 = vld [vmem:[%s336 + $0x78] sm:$0xff]
        %v425 = vld [vmem:[%s336 + $0x80] sm:$0xff]
        %v426 = vld [vmem:[%s336 + $0x88] sm:$0xff]
        %v427 = vld [vmem:[%s336 + $0x90] sm:$0xff]
        %v428 = vld [vmem:[%s336 + $0x98] sm:$0xff]
        %v429 = vld [vmem:[%s336 + $0xa0] sm:$0xff]
        %v430 = vld [vmem:[%s336 + $0xa8] sm:$0xff]
        %v431 = vld [vmem:[%s336 + $0xb0] sm:$0xff]
        %v432 = vld [vmem:[%s336 + $0xb8] sm:$0xff]
        %v433 = vld [vmem:[%s336 + $0xc0] sm:$0xff]
        %v434 = vld [vmem:[%s336 + $0xc8] sm:$0xff]
        %v435 = vld [vmem:[%s336 + $0xd0] sm:$0xff]
        %v436 = vld [vmem:[%s336 + $0xd8] sm:$0xff]
        %v437 = vld [vmem:[%s336 + $0xe0] sm:$0xff]
        %v438 = vld [vmem:[%s336 + $0xe8] sm:$0xff]
        %v439 = vld [vmem:[%s336 + $0xf0] sm:$0xff]
        %v440 = vld [vmem:[%s336 + $0xf8] sm:$0xff]
        %v441 = vld [vmem:[%s336 + $0x100] sm:$0xff]
        %v442 = vld [vmem:[%s336 + $0x108] sm:$0xff]
        %v443 = vld [vmem:[%s336 + $0x110] sm:$0xff]
        %v444 = vld [vmem:[%s336 + $0x118] sm:$0xff]
        %v445 = vld [vmem:[%s336 + $0x120] sm:$0xff]
        %v446 = vld [vmem:[%s336 + $0x128] sm:$0xff]
        %v447 = vld [vmem:[%s336 + $0x130] sm:$0xff]
        %v448 = vld [vmem:[%s336 + $0x138] sm:$0xff]
        %v449 = vld [vmem:[%s336 + $0x140] sm:$0xff]
        %v450 = vld [vmem:[%s336 + $0x148] sm:$0xff]
        %v451 = vld [vmem:[%s336 + $0x150] sm:$0xff]
        %v452 = vld [vmem:[%s336 + $0x158] sm:$0xff]
        %v453 = vld [vmem:[%s336 + $0x160] sm:$0xff]
        %v454 = vld [vmem:[%s336 + $0x168] sm:$0xff]
        %v455 = vld [vmem:[%s336 + $0x170] sm:$0xff]
        %v456 = vld [vmem:[%s336 + $0x178] sm:$0xff]
        %v457 = vld [vmem:[%s336 + $0x180] sm:$0xff]
        %v458 = vld [vmem:[%s336 + $0x188] sm:$0xff]
        %v459 = vld [vmem:[%s336 + $0x190] sm:$0xff]
        %v460 = vld [vmem:[%s336 + $0x198] sm:$0xff]
        %v461 = vld [vmem:[%s336 + $0x1a0] sm:$0xff]
        %v462 = vld [vmem:[%s336 + $0x1a8] sm:$0xff]
        %v463 = vld [vmem:[%s336 + $0x1b0] sm:$0xff]
        %v464 = vld [vmem:[%s336 + $0x1b8] sm:$0xff]
        %v465 = vld [vmem:[%s336 + $0x1c0] sm:$0xff]
        %v466 = vld [vmem:[%s336 + $0x1c8] sm:$0xff]
        %v467 = vld [vmem:[%s336 + $0x1d0] sm:$0xff]
        %v468 = vld [vmem:[%s336 + $0x1d8] sm:$0xff]
        %v469 = vld [vmem:[%s336 + $0x1e0] sm:$0xff]
        %v470 = vld [vmem:[%s336 + $0x1e8] sm:$0xff]
        %v471 = vld [vmem:[%s336 + $0x1f0] sm:$0xff]
        %v472 = vld [vmem:[%s336 + $0x1f8] sm:$0xff]
        %v473 = vld [vmem:[%s336 + $0x200] sm:$0xff]
        %v474 = vld [vmem:[%s336 + $0x208] sm:$0xff]
        %v475 = vld [vmem:[%s336 + $0x210] sm:$0xff]
        %v476 = vld [vmem:[%s336 + $0x218] sm:$0xff]
        %v477 = vld [vmem:[%s336 + $0x220] sm:$0xff]
        %v478 = vld [vmem:[%s336 + $0x228] sm:$0xff]
        %v479 = vld [vmem:[%s336 + $0x230] sm:$0xff]
        %v480 = vld [vmem:[%s336 + $0x238] sm:$0xff]
        %v481 = vld [vmem:[%s336 + $0x240] sm:$0xff]
        %v482 = vld [vmem:[%s336 + $0x248] sm:$0xff]
        %v483 = vld [vmem:[%s336 + $0x250] sm:$0xff]
        %v484 = vld [vmem:[%s336 + $0x258] sm:$0xff]
        %v485 = vld [vmem:[%s336 + $0x260] sm:$0xff]
        %v486 = vld [vmem:[%s336 + $0x268] sm:$0xff]
        %v487 = vld [vmem:[%s336 + $0x270] sm:$0xff]
        %v488 = vld [vmem:[%s336 + $0x278] sm:$0xff]
        %v489 = vld [vmem:[%s336 + $0x280] sm:$0xff]
        %v490 = vld [vmem:[%s336 + $0x288] sm:$0xff]
        %v491 = vld [vmem:[%s336 + $0x290] sm:$0xff]
        %v492 = vld [vmem:[%s336 + $0x298] sm:$0xff]
        %v493 = vld [vmem:[%s336 + $0x2a0] sm:$0xff]
        %v494 = vld [vmem:[%s336 + $0x2a8] sm:$0xff]
        %v495 = vld [vmem:[%s336 + $0x2b0] sm:$0xff]
        %v496 = vld [vmem:[%s336 + $0x2b8] sm:$0xff]
        %v497 = vld [vmem:[%s336 + $0x2c0] sm:$0xff]
        %v498 = vld [vmem:[%s336 + $0x2c8] sm:$0xff]
        %v499 = vld [vmem:[%s336 + $0x2d0] sm:$0xff]
        %v500 = vld [vmem:[%s336 + $0x2d8] sm:$0xff]
        %v501 = vld [vmem:[%s336 + $0x2e0] sm:$0xff]
        %v502 = vld [vmem:[%s336 + $0x2e8] sm:$0xff]
        %v503 = vld [vmem:[%s336 + $0x2f0] sm:$0xff]
        %v504 = vld [vmem:[%s336 + $0x2f8] sm:$0xff]
        %v505 = vld [vmem:[%s336 + $0x300] sm:$0xff]
        %v506 = vld [vmem:[%s336 + $0x308] sm:$0xff]
        %v507 = vld [vmem:[%s336 + $0x310] sm:$0xff]
        %v508 = vld [vmem:[%s336 + $0x318] sm:$0xff]
        %v509 = vld [vmem:[%s336 + $0x320] sm:$0xff]
        %v510 = vld [vmem:[%s336 + $0x328] sm:$0xff]
        %v511 = vld [vmem:[%s336 + $0x330] sm:$0xff]
        %v512 = vld [vmem:[%s336 + $0x338] sm:$0xff]
        %v513 = vld [vmem:[%s336 + $0x340] sm:$0xff]
        %v514 = vld [vmem:[%s336 + $0x348] sm:$0xff]
        %v515 = vld [vmem:[%s336 + $0x350] sm:$0xff]
        %v516 = vld [vmem:[%s336 + $0x358] sm:$0xff]
        %v517 = vld [vmem:[%s336 + $0x360] sm:$0xff]
        %v518 = vld [vmem:[%s336 + $0x368] sm:$0xff]
        %v519 = vld [vmem:[%s336 + $0x370] sm:$0xff]
        %v520 = vld [vmem:[%s336 + $0x378] sm:$0xff]
        %v521 = vld [vmem:[%s336 + $0x380] sm:$0xff]
        %v522 = vld [vmem:[%s336 + $0x388] sm:$0xff]
        %v523 = vld [vmem:[%s336 + $0x390] sm:$0xff]
        %v524 = vld [vmem:[%s336 + $0x398] sm:$0xff]
        %v525 = vld [vmem:[%s336 + $0x3a0] sm:$0xff]
        %v526 = vld [vmem:[%s336 + $0x3a8] sm:$0xff]
        %v527 = vld [vmem:[%s336 + $0x3b0] sm:$0xff]
        %v528 = vld [vmem:[%s336 + $0x3b8] sm:$0xff]
        %v529 = vld [vmem:[%s336 + $0x3c0] sm:$0xff]
        %v530 = vld [vmem:[%s336 + $0x3c8] sm:$0xff]
        %v531 = vld [vmem:[%s336 + $0x3d0] sm:$0xff]
        %v532 = vld [vmem:[%s336 + $0x3d8] sm:$0xff]
        %v533 = vld [vmem:[%s336 + $0x3e0] sm:$0xff]
        %v534 = vld [vmem:[%s336 + $0x3e8] sm:$0xff]
        %v535 = vld [vmem:[%s336 + $0x3f0] sm:$0xff]
        %v536 = vld [vmem:[%s336 + $0x3f8] sm:$0xff]
        %v537 = vld [vmem:[%s336 + $0x400] sm:$0xff]
        %v538 = vld [vmem:[%s336 + $0x408] sm:$0xff]
        %v539 = vld [vmem:[%s336 + $0x410] sm:$0xff]
        %v540 = vld [vmem:[%s336 + $0x418] sm:$0xff]
        %v541 = vld [vmem:[%s336 + $0x420] sm:$0xff]
        %v542 = vld [vmem:[%s336 + $0x428] sm:$0xff]
        %v543 = vld [vmem:[%s336 + $0x430] sm:$0xff]
        %v544 = vld [vmem:[%s336 + $0x438] sm:$0xff]
        %v545 = vld [vmem:[%s336 + $0x440] sm:$0xff]
        %v546 = vld [vmem:[%s336 + $0x448] sm:$0xff]
        %v547 = vld [vmem:[%s336 + $0x450] sm:$0xff]
        %v548 = vld [vmem:[%s336 + $0x458] sm:$0xff]
        %v549 = vld [vmem:[%s336 + $0x460] sm:$0xff]
        %v550 = vld [vmem:[%s336 + $0x468] sm:$0xff]
        %v551 = vld [vmem:[%s336 + $0x470] sm:$0xff]
        %v552 = vld [vmem:[%s336 + $0x478] sm:$0xff]
        %v553 = vld [vmem:[%s336 + $0x480] sm:$0xff]
        %v554 = vld [vmem:[%s336 + $0x488] sm:$0xff]
        %v555 = vld [vmem:[%s336 + $0x490] sm:$0xff]
        %v556 = vld [vmem:[%s336 + $0x498] sm:$0xff]
        %v557 = vld [vmem:[%s336 + $0x4a0] sm:$0xff]
        %v558 = vld [vmem:[%s336 + $0x4a8] sm:$0xff]
        %v559 = vld [vmem:[%s336 + $0x4b0] sm:$0xff]
        %v560 = vld [vmem:[%s336 + $0x4b8] sm:$0xff]
        %v561 = vld [vmem:[%s336 + $0x4c0] sm:$0xff]
        %v562 = vld [vmem:[%s336 + $0x4c8] sm:$0xff]
        %v563 = vld [vmem:[%s336 + $0x4d0] sm:$0xff]
        %v564 = vld [vmem:[%s336 + $0x4d8] sm:$0xff]
        %v565 = vld [vmem:[%s336 + $0x4e0] sm:$0xff]
        %v566 = vld [vmem:[%s336 + $0x4e8] sm:$0xff]
        %v567 = vld [vmem:[%s336 + $0x4f0] sm:$0xff]
        %v568 = vld [vmem:[%s336 + $0x4f8] sm:$0xff]
        %v569 = vld [vmem:[%s336 + $0x500] sm:$0xff]
        %v570 = vld [vmem:[%s336 + $0x508] sm:$0xff]
        %v571 = vld [vmem:[%s336 + $0x510] sm:$0xff]
        %v572 = vld [vmem:[%s336 + $0x518] sm:$0xff]
        %v573 = vld [vmem:[%s336 + $0x520] sm:$0xff]
        %v574 = vld [vmem:[%s336 + $0x528] sm:$0xff]
        %v575 = vld [vmem:[%s336 + $0x530] sm:$0xff]
        %v576 = vld [vmem:[%s336 + $0x538] sm:$0xff]
        %v577 = vld [vmem:[%s336 + $0x540] sm:$0xff]
        %v578 = vld [vmem:[%s336 + $0x548] sm:$0xff]
        %v579 = vld [vmem:[%s336 + $0x550] sm:$0xff]
        %v580 = vld [vmem:[%s336 + $0x558] sm:$0xff]
        %v581 = vld [vmem:[%s336 + $0x560] sm:$0xff]
        %v582 = vld [vmem:[%s336 + $0x568] sm:$0xff]
        %v583 = vld [vmem:[%s336 + $0x570] sm:$0xff]
        %v584 = vld [vmem:[%s336 + $0x578] sm:$0xff]
        %v585 = vld [vmem:[%s336 + $0x580] sm:$0xff]
        %v586 = vld [vmem:[%s336 + $0x588] sm:$0xff]
        %v587 = vld [vmem:[%s336 + $0x590] sm:$0xff]
        %v588 = vld [vmem:[%s336 + $0x598] sm:$0xff]
        %v589 = vld [vmem:[%s336 + $0x5a0] sm:$0xff]
        %v590 = vld [vmem:[%s336 + $0x5a8] sm:$0xff]
        %v591 = vld [vmem:[%s336 + $0x5b0] sm:$0xff]
        %v592 = vld [vmem:[%s336 + $0x5b8] sm:$0xff]
        %v593 = vld [vmem:[%s336 + $0x5c0] sm:$0xff]
        %v594 = vld [vmem:[%s336 + $0x5c8] sm:$0xff]
        %v595 = vld [vmem:[%s336 + $0x5d0] sm:$0xff]
        %v596 = vld [vmem:[%s336 + $0x5d8] sm:$0xff]
        %v597 = vld [vmem:[%s336 + $0x5e0] sm:$0xff]
        %v598 = vld [vmem:[%s336 + $0x5e8] sm:$0xff]
        %v599 = vld [vmem:[%s336 + $0x5f0] sm:$0xff]
        %v600 = vld [vmem:[%s336 + $0x5f8] sm:$0xff]
        %v601 = vld [vmem:[%s336 + $0x600] sm:$0xff]
        %v602 = vld [vmem:[%s336 + $0x608] sm:$0xff]
        %v603 = vld [vmem:[%s336 + $0x610] sm:$0xff]
        %v604 = vld [vmem:[%s336 + $0x618] sm:$0xff]
        %v605 = vld [vmem:[%s336 + $0x620] sm:$0xff]
        %v606 = vld [vmem:[%s336 + $0x628] sm:$0xff]
        %v607 = vld [vmem:[%s336 + $0x630] sm:$0xff]
        %v608 = vld [vmem:[%s336 + $0x638] sm:$0xff]
        %v609 = vld [vmem:[%s336 + $0x640] sm:$0xff]
        %v610 = vld [vmem:[%s336 + $0x648] sm:$0xff]
        %v611 = vld [vmem:[%s336 + $0x650] sm:$0xff]
        %v612 = vld [vmem:[%s336 + $0x658] sm:$0xff]
        %v613 = vld [vmem:[%s336 + $0x660] sm:$0xff]
        %v614 = vld [vmem:[%s336 + $0x668] sm:$0xff]
        %v615 = vld [vmem:[%s336 + $0x670] sm:$0xff]
        %v616 = vld [vmem:[%s336 + $0x678] sm:$0xff]
        %v617 = vld [vmem:[%s336 + $0x680] sm:$0xff]
        %v618 = vld [vmem:[%s336 + $0x688] sm:$0xff]
        %v619 = vld [vmem:[%s336 + $0x690] sm:$0xff]
        %v620 = vld [vmem:[%s336 + $0x698] sm:$0xff]
        %v621 = vld [vmem:[%s336 + $0x6a0] sm:$0xff]
        %v622 = vld [vmem:[%s336 + $0x6a8] sm:$0xff]
        %v623 = vld [vmem:[%s336 + $0x6b0] sm:$0xff]
        %v624 = vld [vmem:[%s336 + $0x6b8] sm:$0xff]
        %v625 = vld [vmem:[%s336 + $0x6c0] sm:$0xff]
        %v626 = vld [vmem:[%s336 + $0x6c8] sm:$0xff]
        %v627 = vld [vmem:[%s336 + $0x6d0] sm:$0xff]
        %v628 = vld [vmem:[%s336 + $0x6d8] sm:$0xff]
        %v629 = vld [vmem:[%s336 + $0x6e0] sm:$0xff]
        %v630 = vld [vmem:[%s336 + $0x6e8] sm:$0xff]
        %v631 = vld [vmem:[%s336 + $0x6f0] sm:$0xff]
        %v632 = vld [vmem:[%s336 + $0x6f8] sm:$0xff]
        %v633 = vpack.c.bf16 %v416, %v409
        %v634 = vpack.c.bf16 %v417, %v410
        %v635 = vpack.c.bf16 %v418, %v411
        %v636 = vpack.c.bf16 %v419, %v412
        %v637 = vpack.c.bf16 %v420, %v413
        %v638 = vpack.c.bf16 %v421, %v414
        %v639 = vpack.c.bf16 %v422, %v415
        %v640 = vpack.c.bf16 %v430, %v423
        %v641 = vpack.c.bf16 %v431, %v424
        %v642 = vpack.c.bf16 %v432, %v425
        %v643 = vpack.c.bf16 %v433, %v426
        %v644 = vpack.c.bf16 %v434, %v427
        %v645 = vpack.c.bf16 %v435, %v428
        %v646 = vpack.c.bf16 %v436, %v429
        %v647 = vpack.c.bf16 %v444, %v437
        %v648 = vpack.c.bf16 %v445, %v438
        %v649 = vpack.c.bf16 %v446, %v439
        %v650 = vpack.c.bf16 %v447, %v440
        %v651 = vpack.c.bf16 %v448, %v441
        %v652 = vpack.c.bf16 %v449, %v442
        %v653 = vpack.c.bf16 %v450, %v443
        %v654 = vpack.c.bf16 %v458, %v451
        %v655 = vpack.c.bf16 %v459, %v452
        %v656 = vpack.c.bf16 %v460, %v453
        %v657 = vpack.c.bf16 %v461, %v454
        %v658 = vpack.c.bf16 %v462, %v455
        %v659 = vpack.c.bf16 %v463, %v456
        %v660 = vpack.c.bf16 %v464, %v457
        %v661 = vpack.c.bf16 %v472, %v465
        %v662 = vpack.c.bf16 %v473, %v466
        %v663 = vpack.c.bf16 %v474, %v467
        %v664 = vpack.c.bf16 %v475, %v468
        %v665 = vpack.c.bf16 %v476, %v469
        %v666 = vpack.c.bf16 %v477, %v470
        %v667 = vpack.c.bf16 %v478, %v471
        %v668 = vpack.c.bf16 %v486, %v479
        %v669 = vpack.c.bf16 %v487, %v480
        %v670 = vpack.c.bf16 %v488, %v481
        %v671 = vpack.c.bf16 %v489, %v482
        %v672 = vpack.c.bf16 %v490, %v483
        %v673 = vpack.c.bf16 %v491, %v484
        %v674 = vpack.c.bf16 %v492, %v485
        %v675 = vpack.c.bf16 %v500, %v493
        %v676 = vpack.c.bf16 %v501, %v494
        %v677 = vpack.c.bf16 %v502, %v495
        %v678 = vpack.c.bf16 %v503, %v496
        %v679 = vpack.c.bf16 %v504, %v497
        %v680 = vpack.c.bf16 %v505, %v498
        %v681 = vpack.c.bf16 %v506, %v499
        %v682 = vpack.c.bf16 %v514, %v507
        %v683 = vpack.c.bf16 %v515, %v508
        %v684 = vpack.c.bf16 %v516, %v509
        %v685 = vpack.c.bf16 %v517, %v510
        %v686 = vpack.c.bf16 %v518, %v511
        %v687 = vpack.c.bf16 %v519, %v512
        %v688 = vpack.c.bf16 %v520, %v513
        %v689 = vpack.c.bf16 %v528, %v521
        %v690 = vpack.c.bf16 %v529, %v522
        %v691 = vpack.c.bf16 %v530, %v523
        %v692 = vpack.c.bf16 %v531, %v524
        %v693 = vpack.c.bf16 %v532, %v525
        %v694 = vpack.c.bf16 %v533, %v526
        %v695 = vpack.c.bf16 %v534, %v527
        %v696 = vpack.c.bf16 %v542, %v535
        %v697 = vpack.c.bf16 %v543, %v536
        %v698 = vpack.c.bf16 %v544, %v537
        %v699 = vpack.c.bf16 %v545, %v538
        %v700 = vpack.c.bf16 %v546, %v539
        %v701 = vpack.c.bf16 %v547, %v540
        %v702 = vpack.c.bf16 %v548, %v541
        %v703 = vpack.c.bf16 %v556, %v549
        %v704 = vpack.c.bf16 %v557, %v550
        %v705 = vpack.c.bf16 %v558, %v551
        %v706 = vpack.c.bf16 %v559, %v552
        %v707 = vpack.c.bf16 %v560, %v553
        %v708 = vpack.c.bf16 %v561, %v554
        %v709 = vpack.c.bf16 %v562, %v555
        %v710 = vpack.c.bf16 %v570, %v563
        %v711 = vpack.c.bf16 %v571, %v564
        %v712 = vpack.c.bf16 %v572, %v565
        %v713 = vpack.c.bf16 %v573, %v566
        %v714 = vpack.c.bf16 %v574, %v567
        %v715 = vpack.c.bf16 %v575, %v568
        %v716 = vpack.c.bf16 %v576, %v569
        %v717 = vpack.c.bf16 %v584, %v577
        %v718 = vpack.c.bf16 %v585, %v578
        %v719 = vpack.c.bf16 %v586, %v579
        %v720 = vpack.c.bf16 %v587, %v580
        %v721 = vpack.c.bf16 %v588, %v581
        %v722 = vpack.c.bf16 %v589, %v582
        %v723 = vpack.c.bf16 %v590, %v583
        %v724 = vpack.c.bf16 %v598, %v591
        %v725 = vpack.c.bf16 %v599, %v592
        %v726 = vpack.c.bf16 %v600, %v593
        %v727 = vpack.c.bf16 %v601, %v594
        %v728 = vpack.c.bf16 %v602, %v595
        %v729 = vpack.c.bf16 %v603, %v596
        %v730 = vpack.c.bf16 %v604, %v597
        %v731 = vpack.c.bf16 %v612, %v605
        %v732 = vpack.c.bf16 %v613, %v606
        %v733 = vpack.c.bf16 %v614, %v607
        %v734 = vpack.c.bf16 %v615, %v608
        %v735 = vpack.c.bf16 %v616, %v609
        %v736 = vpack.c.bf16 %v617, %v610
        %v737 = vpack.c.bf16 %v618, %v611
        %v738 = vpack.c.bf16 %v626, %v619
        %v739 = vpack.c.bf16 %v627, %v620
        %v740 = vpack.c.bf16 %v628, %v621
        %v741 = vpack.c.bf16 %v629, %v622
        %v742 = vpack.c.bf16 %v630, %v623
        %v743 = vpack.c.bf16 %v631, %v624
        %v744 = vpack.c.bf16 %v632, %v625
        %v745 = vld [vmem:[#allocation4] sm:$0xf]
        %v746 = vld [vmem:[#allocation4 + $0x4] sm:$0xf]
        %v747 = vld [vmem:[#allocation4 + $0x8] sm:$0xf]
        %v748 = vld [vmem:[#allocation4 + $0xc] sm:$0xf]
        %v749 = vld [vmem:[#allocation4 + $0x10] sm:$0xf]
        %v750 = vld [vmem:[#allocation4 + $0x14] sm:$0xf]
        %v751 = vld [vmem:[#allocation4 + $0x18] sm:$0xf]
        %v752 = vld [vmem:[#allocation4 + $0x1c] sm:$0xf]
        %v753 = vld [vmem:[#allocation4 + $0x20] sm:$0xf]
        %v754 = vld [vmem:[#allocation4 + $0x24] sm:$0xf]
        %v755 = vld [vmem:[#allocation4 + $0x28] sm:$0xf]
        %v756 = vld [vmem:[#allocation4 + $0x2c] sm:$0xf]
        %v757 = vld [vmem:[#allocation4 + $0x30] sm:$0xf]
        %v758 = vld [vmem:[#allocation4 + $0x34] sm:$0xf]
        %v759 = vld [vmem:[#allocation4 + $0x38] sm:$0xf]
        %v760 = vld [vmem:[#allocation4 + $0x3c] sm:$0xf]
        %v761 = vld [vmem:[#allocation4 + $0x40] sm:$0xf]
        %v762 = vld [vmem:[#allocation4 + $0x44] sm:$0xf]
        %v763 = vld [vmem:[#allocation4 + $0x48] sm:$0xf]
        %v764 = vld [vmem:[#allocation4 + $0x4c] sm:$0xf]
        %v765 = vld [vmem:[#allocation4 + $0x50] sm:$0xf]
        %v766 = vld [vmem:[#allocation4 + $0x54] sm:$0xf]
        %v767 = vld [vmem:[#allocation4 + $0x58] sm:$0xf]
        %v768 = vld [vmem:[#allocation4 + $0x5c] sm:$0xf]
        %v769 = vld [vmem:[#allocation4 + $0x60] sm:$0xf]
        %v770 = vld [vmem:[#allocation4 + $0x64] sm:$0xf]
        %v771 = vld [vmem:[#allocation4 + $0x68] sm:$0xf]
        %v772 = vld [vmem:[#allocation4 + $0x6c] sm:$0xf]
        %v773 = vld [vmem:[#allocation4 + $0x70] sm:$0xf]
        %v774 = vld [vmem:[#allocation4 + $0x74] sm:$0xf]
        %v775 = vld [vmem:[#allocation4 + $0x78] sm:$0xf]
        %v776 = vld [vmem:[#allocation4 + $0x7c] sm:$0xf]
        %v777 = vld [vmem:[#allocation4 + $0x80] sm:$0xf]
        %v778 = vld [vmem:[#allocation4 + $0x84] sm:$0xf]
        %v779 = vld [vmem:[#allocation4 + $0x88] sm:$0xf]
        %v780 = vld [vmem:[#allocation4 + $0x8c] sm:$0xf]
        %v781 = vld [vmem:[#allocation4 + $0x90] sm:$0xf]
        %v782 = vld [vmem:[#allocation4 + $0x94] sm:$0xf]
        %v783 = vld [vmem:[#allocation4 + $0x98] sm:$0xf]
        %v784 = vld [vmem:[#allocation4 + $0x9c] sm:$0xf]
        %v785 = vld [vmem:[#allocation4 + $0xa0] sm:$0xf]
        %v786 = vld [vmem:[#allocation4 + $0xa4] sm:$0xf]
        %v787 = vld [vmem:[#allocation4 + $0xa8] sm:$0xf]
        %v788 = vld [vmem:[#allocation4 + $0xac] sm:$0xf]
        %v789 = vld [vmem:[#allocation4 + $0xb0] sm:$0xf]
        %v790 = vld [vmem:[#allocation4 + $0xb4] sm:$0xf]
        %v791 = vld [vmem:[#allocation4 + $0xb8] sm:$0xf]
        %v792 = vld [vmem:[#allocation4 + $0xbc] sm:$0xf]
        %v793 = vld [vmem:[#allocation4 + $0xc0] sm:$0xf]
        %v794 = vld [vmem:[#allocation4 + $0xc4] sm:$0xf]
        %v795 = vld [vmem:[#allocation4 + $0xc8] sm:$0xf]
        %v796 = vld [vmem:[#allocation4 + $0xcc] sm:$0xf]
        %v797 = vld [vmem:[#allocation4 + $0xd0] sm:$0xf]
        %v798 = vld [vmem:[#allocation4 + $0xd4] sm:$0xf]
        %v799 = vld [vmem:[#allocation4 + $0xd8] sm:$0xf]
        %v800 = vld [vmem:[#allocation4 + $0xdc] sm:$0xf]
        %v801 = vld [vmem:[#allocation4 + $0xe0] sm:$0xf]
        %v802 = vld [vmem:[#allocation4 + $0xe4] sm:$0xf]
        %v803 = vld [vmem:[#allocation4 + $0xe8] sm:$0xf]
        %v804 = vld [vmem:[#allocation4 + $0xec] sm:$0xf]
        %v805 = vld [vmem:[#allocation4 + $0xf0] sm:$0xf]
        %v806 = vld [vmem:[#allocation4 + $0xf4] sm:$0xf]
        %v807 = vld [vmem:[#allocation4 + $0xf8] sm:$0xf]
        %v808 = vld [vmem:[#allocation4 + $0xfc] sm:$0xf]
        %v809 = vld [vmem:[#allocation4 + $0x100] sm:$0xf]
        %v810 = vld [vmem:[#allocation4 + $0x104] sm:$0xf]
        %v811 = vld [vmem:[#allocation4 + $0x108] sm:$0xf]
        %v812 = vld [vmem:[#allocation4 + $0x10c] sm:$0xf]
        %v813 = vld [vmem:[#allocation4 + $0x110] sm:$0xf]
        %v814 = vld [vmem:[#allocation4 + $0x114] sm:$0xf]
        %v815 = vld [vmem:[#allocation4 + $0x118] sm:$0xf]
        %v816 = vld [vmem:[#allocation4 + $0x11c] sm:$0xf]
        %v817 = vld [vmem:[#allocation4 + $0x120] sm:$0xf]
        %v818 = vld [vmem:[#allocation4 + $0x124] sm:$0xf]
        %v819 = vld [vmem:[#allocation4 + $0x128] sm:$0xf]
        %v820 = vld [vmem:[#allocation4 + $0x12c] sm:$0xf]
        %v821 = vld [vmem:[#allocation4 + $0x130] sm:$0xf]
        %v822 = vld [vmem:[#allocation4 + $0x134] sm:$0xf]
        %v823 = vld [vmem:[#allocation4 + $0x138] sm:$0xf]
        %v824 = vld [vmem:[#allocation4 + $0x13c] sm:$0xf]
        %v825 = vld [vmem:[#allocation4 + $0x140] sm:$0xf]
        %v826 = vld [vmem:[#allocation4 + $0x144] sm:$0xf]
        %v827 = vld [vmem:[#allocation4 + $0x148] sm:$0xf]
        %v828 = vld [vmem:[#allocation4 + $0x14c] sm:$0xf]
        %v829 = vld [vmem:[#allocation4 + $0x150] sm:$0xf]
        %v830 = vld [vmem:[#allocation4 + $0x154] sm:$0xf]
        %v831 = vld [vmem:[#allocation4 + $0x158] sm:$0xf]
        %v832 = vld [vmem:[#allocation4 + $0x15c] sm:$0xf]
        %v833 = vld [vmem:[#allocation4 + $0x160] sm:$0xf]
        %v834 = vld [vmem:[#allocation4 + $0x164] sm:$0xf]
        %v835 = vld [vmem:[#allocation4 + $0x168] sm:$0xf]
        %v836 = vld [vmem:[#allocation4 + $0x16c] sm:$0xf]
        %v837 = vld [vmem:[#allocation4 + $0x170] sm:$0xf]
        %v838 = vld [vmem:[#allocation4 + $0x174] sm:$0xf]
        %v839 = vld [vmem:[#allocation4 + $0x178] sm:$0xf]
        %v840 = vld [vmem:[#allocation4 + $0x17c] sm:$0xf]
        %v841 = vld [vmem:[#allocation4 + $0x180] sm:$0xf]
        %v842 = vld [vmem:[#allocation4 + $0x184] sm:$0xf]
        %v843 = vld [vmem:[#allocation6] sm:$0x1]
        %v845 = vperm.slane %v843, 0
        %v945 = vunpack.c.l.b16 %v745
        %v946 = vunpack.c.l.b16 %v746
        %v947 = vunpack.c.l.b16 %v747
        %v948 = vunpack.c.l.b16 %v748
        %v949 = vunpack.c.l.b16 %v749
        %v950 = vunpack.c.l.b16 %v750
        %v951 = vunpack.c.l.b16 %v751
        %v952 = vunpack.c.l.b16 %v752
        %v953 = vunpack.c.l.b16 %v753
        %v954 = vunpack.c.l.b16 %v754
        %v955 = vunpack.c.l.b16 %v755
        %v956 = vunpack.c.l.b16 %v756
        %v957 = vunpack.c.l.b16 %v757
        %v958 = vunpack.c.l.b16 %v758
        %v959 = vunpack.c.l.b16 %v759
        %v960 = vunpack.c.l.b16 %v760
        %v961 = vunpack.c.l.b16 %v761
        %v962 = vunpack.c.l.b16 %v762
        %v963 = vunpack.c.l.b16 %v763
        %v964 = vunpack.c.l.b16 %v764
        %v965 = vunpack.c.l.b16 %v765
        %v966 = vunpack.c.l.b16 %v766
        %v967 = vunpack.c.l.b16 %v767
        %v968 = vunpack.c.l.b16 %v768
        %v969 = vunpack.c.l.b16 %v769
        %v970 = vunpack.c.l.b16 %v770
        %v971 = vunpack.c.l.b16 %v771
        %v972 = vunpack.c.l.b16 %v772
        %v973 = vunpack.c.l.b16 %v773
        %v974 = vunpack.c.l.b16 %v774
        %v975 = vunpack.c.l.b16 %v775
        %v976 = vunpack.c.l.b16 %v776
        %v977 = vunpack.c.l.b16 %v777
        %v978 = vunpack.c.l.b16 %v778
        %v979 = vunpack.c.l.b16 %v779
        %v980 = vunpack.c.l.b16 %v780
        %v981 = vunpack.c.l.b16 %v781
        %v982 = vunpack.c.l.b16 %v782
        %v983 = vunpack.c.l.b16 %v783
        %v984 = vunpack.c.l.b16 %v784
        %v985 = vunpack.c.l.b16 %v785
        %v986 = vunpack.c.l.b16 %v786
        %v987 = vunpack.c.l.b16 %v787
        %v988 = vunpack.c.l.b16 %v788
        %v989 = vunpack.c.l.b16 %v789
        %v990 = vunpack.c.l.b16 %v790
        %v991 = vunpack.c.l.b16 %v791
        %v992 = vunpack.c.l.b16 %v792
        %v993 = vunpack.c.l.b16 %v793
        %v994 = vunpack.c.l.b16 %v794
        %v995 = vunpack.c.l.b16 %v795
        %v996 = vunpack.c.l.b16 %v796
        %v997 = vunpack.c.l.b16 %v797
        %v998 = vunpack.c.l.b16 %v798
        %v999 = vunpack.c.l.b16 %v799
        %v1000 = vunpack.c.l.b16 %v800
        %v1001 = vunpack.c.l.b16 %v801
        %v1002 = vunpack.c.l.b16 %v802
        %v1003 = vunpack.c.l.b16 %v803
        %v1004 = vunpack.c.l.b16 %v804
        %v1005 = vunpack.c.l.b16 %v805
        %v1006 = vunpack.c.l.b16 %v806
        %v1007 = vunpack.c.l.b16 %v807
        %v1008 = vunpack.c.l.b16 %v808
        %v1009 = vunpack.c.l.b16 %v809
        %v1010 = vunpack.c.l.b16 %v810
        %v1011 = vunpack.c.l.b16 %v811
        %v1012 = vunpack.c.l.b16 %v812
        %v1013 = vunpack.c.l.b16 %v813
        %v1014 = vunpack.c.l.b16 %v814
        %v1015 = vunpack.c.l.b16 %v815
        %v1016 = vunpack.c.l.b16 %v816
        %v1017 = vunpack.c.l.b16 %v817
        %v1018 = vunpack.c.l.b16 %v818
        %v1019 = vunpack.c.l.b16 %v819
        %v1020 = vunpack.c.l.b16 %v820
        %v1021 = vunpack.c.l.b16 %v821
        %v1022 = vunpack.c.l.b16 %v822
        %v1023 = vunpack.c.l.b16 %v823
        %v1024 = vunpack.c.l.b16 %v824
        %v1025 = vunpack.c.l.b16 %v825
        %v1026 = vunpack.c.l.b16 %v826
        %v1027 = vunpack.c.l.b16 %v827
        %v1028 = vunpack.c.l.b16 %v828
        %v1029 = vunpack.c.l.b16 %v829
        %v1030 = vunpack.c.l.b16 %v830
        %v1031 = vunpack.c.l.b16 %v831
        %v1032 = vunpack.c.l.b16 %v832
        %v1033 = vunpack.c.l.b16 %v833
        %v1034 = vunpack.c.l.b16 %v834
        %v1035 = vunpack.c.l.b16 %v835
        %v1036 = vunpack.c.l.b16 %v836
        %v1037 = vunpack.c.l.b16 %v837
        %v1038 = vunpack.c.l.b16 %v838
        %v1039 = vunpack.c.l.b16 %v839
        %v1040 = vunpack.c.l.b16 %v840
        %v1041 = vunpack.c.l.b16 %v841
        %v1042 = vunpack.c.l.b16 %v842
        %v1043 = vpack.c.b16 %v946, %v945
        %v1044 = vpack.c.b16 %v948, %v947
        %v1045 = vpack.c.b16 %v950, %v949
        %v1046 = vpack.c.b16 %v952, %v951
        %v1047 = vpack.c.b16 %v954, %v953
        %v1048 = vpack.c.b16 %v956, %v955
        %v1049 = vpack.c.b16 %v958, %v957
        %v1050 = vpack.c.b16 %v960, %v959
        %v1051 = vpack.c.b16 %v962, %v961
        %v1052 = vpack.c.b16 %v964, %v963
        %v1053 = vpack.c.b16 %v966, %v965
        %v1054 = vpack.c.b16 %v968, %v967
        %v1055 = vpack.c.b16 %v970, %v969
        %v1056 = vpack.c.b16 %v972, %v971
        %v1057 = vpack.c.b16 %v974, %v973
        %v1058 = vpack.c.b16 %v976, %v975
        %v1059 = vpack.c.b16 %v978, %v977
        %v1060 = vpack.c.b16 %v980, %v979
        %v1061 = vpack.c.b16 %v982, %v981
        %v1062 = vpack.c.b16 %v984, %v983
        %v1063 = vpack.c.b16 %v986, %v985
        %v1064 = vpack.c.b16 %v988, %v987
        %v1065 = vpack.c.b16 %v990, %v989
        %v1066 = vpack.c.b16 %v992, %v991
        %v1067 = vpack.c.b16 %v994, %v993
        %v1068 = vpack.c.b16 %v996, %v995
        %v1069 = vpack.c.b16 %v998, %v997
        %v1070 = vpack.c.b16 %v1000, %v999
        %v1071 = vpack.c.b16 %v1002, %v1001
        %v1072 = vpack.c.b16 %v1004, %v1003
        %v1073 = vpack.c.b16 %v1006, %v1005
        %v1074 = vpack.c.b16 %v1008, %v1007
        %v1075 = vpack.c.b16 %v1010, %v1009
        %v1076 = vpack.c.b16 %v1012, %v1011
        %v1077 = vpack.c.b16 %v1014, %v1013
        %v1078 = vpack.c.b16 %v1016, %v1015
        %v1079 = vpack.c.b16 %v1018, %v1017
        %v1080 = vpack.c.b16 %v1020, %v1019
        %v1081 = vpack.c.b16 %v1022, %v1021
        %v1082 = vpack.c.b16 %v1024, %v1023
        %v1083 = vpack.c.b16 %v1026, %v1025
        %v1084 = vpack.c.b16 %v1028, %v1027
        %v1085 = vpack.c.b16 %v1030, %v1029
        %v1086 = vpack.c.b16 %v1032, %v1031
        %v1087 = vpack.c.b16 %v1034, %v1033
        %v1088 = vpack.c.b16 %v1036, %v1035
        %v1089 = vpack.c.b16 %v1038, %v1037
        %v1090 = vpack.c.b16 %v1040, %v1039
        %v1091 = vpack.c.b16 %v1042, %v1041
        %vm1141 = vcmask 130048
        %v1143 = vsel %vm1141, %v639, 0
        %v1146 = vsel %vm1141, %v646, 0
        %v1149 = vsel %vm1141, %v653, 0
        %v1152 = vsel %vm1141, %v660, 0
        %v1155 = vsel %vm1141, %v667, 0
        %v1158 = vsel %vm1141, %v674, 0
        %v1161 = vsel %vm1141, %v681, 0
        %v1164 = vsel %vm1141, %v688, 0
        %v1167 = vsel %vm1141, %v695, 0
        %v1170 = vsel %vm1141, %v702, 0
        %v1173 = vsel %vm1141, %v709, 0
        %v1176 = vsel %vm1141, %v716, 0
        %v1179 = vsel %vm1141, %v723, 0
        %v1182 = vsel %vm1141, %v730, 0
        %v1185 = vsel %vm1141, %v737, 0
        %v1188 = vsel %vm1141, %v744, 0
        %1190 = vmatpush.bf16.msra.mxu0 %v1050
        %1191 = vmatpush.bf16.msra.mxu0 %v1049
        %1192 = vmatpush.bf16.msra.mxu0 %v1048
        %1193 = vmatpush.bf16.msra.mxu0 %v1047
        %1194 = vmatpush.bf16.msra.mxu0 %v1046
        %1195 = vmatpush.bf16.msra.mxu0 %v1045
        %1196 = vmatpush.bf16.msra.mxu0 %v1044
        %1197 = vmatpush.bf16.msra.mxu0 %v1043
        %1198 = vmatmul.bf16.gmra.mxu0 %v633
        %v1199 = vpop.f32.mrf.mxu0
        %v1200 = vadd.f32 %v845, %v1199
        %v1201 = vpop.f32.mrf.mxu0
        %v1202 = vadd.f32 %v845, %v1201
        %1203 = vmatmul.bf16.gmra.mxu0 %v640
        %v1204 = vpop.f32.mrf.mxu0
        %v1205 = vadd.f32 %v845, %v1204
        %v1206 = vpop.f32.mrf.mxu0
        %v1207 = vadd.f32 %v845, %v1206
        %1208 = vmatmul.bf16.gmra.mxu0 %v647
        %v1209 = vpop.f32.mrf.mxu0
        %v1210 = vadd.f32 %v845, %v1209
        %v1211 = vpop.f32.mrf.mxu0
        %v1212 = vadd.f32 %v845, %v1211
        %1213 = vmatmul.bf16.gmra.mxu0 %v654
        %v1214 = vpop.f32.mrf.mxu0
        %v1215 = vadd.f32 %v845, %v1214
        %v1216 = vpop.f32.mrf.mxu0
        %v1217 = vadd.f32 %v845, %v1216
        %1218 = vmatmul.bf16.gmra.mxu0 %v661
        %v1219 = vpop.f32.mrf.mxu0
        %v1220 = vadd.f32 %v845, %v1219
        %v1221 = vpop.f32.mrf.mxu0
        %v1222 = vadd.f32 %v845, %v1221
        %1223 = vmatmul.bf16.gmra.mxu0 %v668
        %v1224 = vpop.f32.mrf.mxu0
        %v1225 = vadd.f32 %v845, %v1224
        %v1226 = vpop.f32.mrf.mxu0
        %v1227 = vadd.f32 %v845, %v1226
        %1228 = vmatmul.bf16.gmra.mxu0 %v675
        %v1229 = vpop.f32.mrf.mxu0
        %v1230 = vadd.f32 %v845, %v1229
        %v1231 = vpop.f32.mrf.mxu0
        %v1232 = vadd.f32 %v845, %v1231
        %1233 = vmatmul.bf16.gmra.mxu0 %v682
        %v1234 = vpop.f32.mrf.mxu0
        %v1235 = vadd.f32 %v845, %v1234
        %v1236 = vpop.f32.mrf.mxu0
        %v1237 = vadd.f32 %v845, %v1236
        %1238 = vmatmul.bf16.gmra.mxu0 %v689
        %v1239 = vpop.f32.mrf.mxu0
        %v1240 = vadd.f32 %v845, %v1239
        %v1241 = vpop.f32.mrf.mxu0
        %v1242 = vadd.f32 %v845, %v1241
        %1243 = vmatmul.bf16.gmra.mxu0 %v696
        %v1244 = vpop.f32.mrf.mxu0
        %v1245 = vadd.f32 %v845, %v1244
        %v1246 = vpop.f32.mrf.mxu0
        %v1247 = vadd.f32 %v845, %v1246
        %1248 = vmatmul.bf16.gmra.mxu0 %v703
        %v1249 = vpop.f32.mrf.mxu0
        %v1250 = vadd.f32 %v845, %v1249
        %v1251 = vpop.f32.mrf.mxu0
        %v1252 = vadd.f32 %v845, %v1251
        %1253 = vmatmul.bf16.gmra.mxu0 %v710
        %v1254 = vpop.f32.mrf.mxu0
        %v1255 = vadd.f32 %v845, %v1254
        %v1256 = vpop.f32.mrf.mxu0
        %v1257 = vadd.f32 %v845, %v1256
        %1258 = vmatmul.bf16.gmra.mxu0 %v717
        %v1259 = vpop.f32.mrf.mxu0
        %v1260 = vadd.f32 %v845, %v1259
        %v1261 = vpop.f32.mrf.mxu0
        %v1262 = vadd.f32 %v845, %v1261
        %1263 = vmatmul.bf16.gmra.mxu0 %v724
        %v1264 = vpop.f32.mrf.mxu0
        %v1265 = vadd.f32 %v845, %v1264
        %v1266 = vpop.f32.mrf.mxu0
        %v1267 = vadd.f32 %v845, %v1266
        %1268 = vmatmul.bf16.gmra.mxu0 %v731
        %v1269 = vpop.f32.mrf.mxu0
        %v1270 = vadd.f32 %v845, %v1269
        %v1271 = vpop.f32.mrf.mxu0
        %v1272 = vadd.f32 %v845, %v1271
        %1273 = vmatmul.bf16.gmra.mxu0 %v738
        %v1274 = vpop.f32.mrf.mxu0
        %v1275 = vadd.f32 %v845, %v1274
        %v1276 = vpop.f32.mrf.mxu0
        %v1277 = vadd.f32 %v845, %v1276
        %1278 = vdwg.mxu0
        %1279 = vmatpush.bf16.msra.mxu0 %v1058
        %1280 = vmatpush.bf16.msra.mxu0 %v1057
        %1281 = vmatpush.bf16.msra.mxu0 %v1056
        %1282 = vmatpush.bf16.msra.mxu0 %v1055
        %1283 = vmatpush.bf16.msra.mxu0 %v1054
        %1284 = vmatpush.bf16.msra.mxu0 %v1053
        %1285 = vmatpush.bf16.msra.mxu0 %v1052
        %1286 = vmatpush.bf16.msra.mxu0 %v1051
        %1287 = vmatmul.bf16.gmra.mxu0 %v634
        %v1288 = vpop.f32.mrf.mxu0
        %v1289 = vadd.f32 %v1200, %v1288
        %v1290 = vpop.f32.mrf.mxu0
        %v1291 = vadd.f32 %v1202, %v1290
        %1292 = vmatmul.bf16.gmra.mxu0 %v641
        %v1293 = vpop.f32.mrf.mxu0
        %v1294 = vadd.f32 %v1205, %v1293
        %v1295 = vpop.f32.mrf.mxu0
        %v1296 = vadd.f32 %v1207, %v1295
        %1297 = vmatmul.bf16.gmra.mxu0 %v648
        %v1298 = vpop.f32.mrf.mxu0
        %v1299 = vadd.f32 %v1210, %v1298
        %v1300 = vpop.f32.mrf.mxu0
        %v1301 = vadd.f32 %v1212, %v1300
        %1302 = vmatmul.bf16.gmra.mxu0 %v655
        %v1303 = vpop.f32.mrf.mxu0
        %v1304 = vadd.f32 %v1215, %v1303
        %v1305 = vpop.f32.mrf.mxu0
        %v1306 = vadd.f32 %v1217, %v1305
        %1307 = vmatmul.bf16.gmra.mxu0 %v662
        %v1308 = vpop.f32.mrf.mxu0
        %v1309 = vadd.f32 %v1220, %v1308
        %v1310 = vpop.f32.mrf.mxu0
        %v1311 = vadd.f32 %v1222, %v1310
        %1312 = vmatmul.bf16.gmra.mxu0 %v669
        %v1313 = vpop.f32.mrf.mxu0
        %v1314 = vadd.f32 %v1225, %v1313
        %v1315 = vpop.f32.mrf.mxu0
        %v1316 = vadd.f32 %v1227, %v1315
        %1317 = vmatmul.bf16.gmra.mxu0 %v676
        %v1318 = vpop.f32.mrf.mxu0
        %v1319 = vadd.f32 %v1230, %v1318
        %v1320 = vpop.f32.mrf.mxu0
        %v1321 = vadd.f32 %v1232, %v1320
        %1322 = vmatmul.bf16.gmra.mxu0 %v683
        %v1323 = vpop.f32.mrf.mxu0
        %v1324 = vadd.f32 %v1235, %v1323
        %v1325 = vpop.f32.mrf.mxu0
        %v1326 = vadd.f32 %v1237, %v1325
        %1327 = vmatmul.bf16.gmra.mxu0 %v690
        %v1328 = vpop.f32.mrf.mxu0
        %v1329 = vadd.f32 %v1240, %v1328
        %v1330 = vpop.f32.mrf.mxu0
        %v1331 = vadd.f32 %v1242, %v1330
        %1332 = vmatmul.bf16.gmra.mxu0 %v697
        %v1333 = vpop.f32.mrf.mxu0
        %v1334 = vadd.f32 %v1245, %v1333
        %v1335 = vpop.f32.mrf.mxu0
        %v1336 = vadd.f32 %v1247, %v1335
        %1337 = vmatmul.bf16.gmra.mxu0 %v704
        %v1338 = vpop.f32.mrf.mxu0
        %v1339 = vadd.f32 %v1250, %v1338
        %v1340 = vpop.f32.mrf.mxu0
        %v1341 = vadd.f32 %v1252, %v1340
        %1342 = vmatmul.bf16.gmra.mxu0 %v711
        %v1343 = vpop.f32.mrf.mxu0
        %v1344 = vadd.f32 %v1255, %v1343
        %v1345 = vpop.f32.mrf.mxu0
        %v1346 = vadd.f32 %v1257, %v1345
        %1347 = vmatmul.bf16.gmra.mxu0 %v718
        %v1348 = vpop.f32.mrf.mxu0
        %v1349 = vadd.f32 %v1260, %v1348
        %v1350 = vpop.f32.mrf.mxu0
        %v1351 = vadd.f32 %v1262, %v1350
        %1352 = vmatmul.bf16.gmra.mxu0 %v725
        %v1353 = vpop.f32.mrf.mxu0
        %v1354 = vadd.f32 %v1265, %v1353
        %v1355 = vpop.f32.mrf.mxu0
        %v1356 = vadd.f32 %v1267, %v1355
        %1357 = vmatmul.bf16.gmra.mxu0 %v732
        %v1358 = vpop.f32.mrf.mxu0
        %v1359 = vadd.f32 %v1270, %v1358
        %v1360 = vpop.f32.mrf.mxu0
        %v1361 = vadd.f32 %v1272, %v1360
        %1362 = vmatmul.bf16.gmra.mxu0 %v739
        %v1363 = vpop.f32.mrf.mxu0
        %v1364 = vadd.f32 %v1275, %v1363
        %v1365 = vpop.f32.mrf.mxu0
        %v1366 = vadd.f32 %v1277, %v1365
        %1367 = vdwg.mxu0
        %1368 = vmatpush.bf16.msra.mxu0 %v1066
        %1369 = vmatpush.bf16.msra.mxu0 %v1065
        %1370 = vmatpush.bf16.msra.mxu0 %v1064
        %1371 = vmatpush.bf16.msra.mxu0 %v1063
        %1372 = vmatpush.bf16.msra.mxu0 %v1062
        %1373 = vmatpush.bf16.msra.mxu0 %v1061
        %1374 = vmatpush.bf16.msra.mxu0 %v1060
        %1375 = vmatpush.bf16.msra.mxu0 %v1059
        %1376 = vmatmul.bf16.gmra.mxu0 %v635
        %v1377 = vpop.f32.mrf.mxu0
        %v1378 = vadd.f32 %v1289, %v1377
        %v1379 = vpop.f32.mrf.mxu0
        %v1380 = vadd.f32 %v1291, %v1379
        %1381 = vmatmul.bf16.gmra.mxu0 %v642
        %v1382 = vpop.f32.mrf.mxu0
        %v1383 = vadd.f32 %v1294, %v1382
        %v1384 = vpop.f32.mrf.mxu0
        %v1385 = vadd.f32 %v1296, %v1384
        %1386 = vmatmul.bf16.gmra.mxu0 %v649
        %v1387 = vpop.f32.mrf.mxu0
        %v1388 = vadd.f32 %v1299, %v1387
        %v1389 = vpop.f32.mrf.mxu0
        %v1390 = vadd.f32 %v1301, %v1389
        %1391 = vmatmul.bf16.gmra.mxu0 %v656
        %v1392 = vpop.f32.mrf.mxu0
        %v1393 = vadd.f32 %v1304, %v1392
        %v1394 = vpop.f32.mrf.mxu0
        %v1395 = vadd.f32 %v1306, %v1394
        %1396 = vmatmul.bf16.gmra.mxu0 %v663
        %v1397 = vpop.f32.mrf.mxu0
        %v1398 = vadd.f32 %v1309, %v1397
        %v1399 = vpop.f32.mrf.mxu0
        %v1400 = vadd.f32 %v1311, %v1399
        %1401 = vmatmul.bf16.gmra.mxu0 %v670
        %v1402 = vpop.f32.mrf.mxu0
        %v1403 = vadd.f32 %v1314, %v1402
        %v1404 = vpop.f32.mrf.mxu0
        %v1405 = vadd.f32 %v1316, %v1404
        %1406 = vmatmul.bf16.gmra.mxu0 %v677
        %v1407 = vpop.f32.mrf.mxu0
        %v1408 = vadd.f32 %v1319, %v1407
        %v1409 = vpop.f32.mrf.mxu0
        %v1410 = vadd.f32 %v1321, %v1409
        %1411 = vmatmul.bf16.gmra.mxu0 %v684
        %v1412 = vpop.f32.mrf.mxu0
        %v1413 = vadd.f32 %v1324, %v1412
        %v1414 = vpop.f32.mrf.mxu0
        %v1415 = vadd.f32 %v1326, %v1414
        %1416 = vmatmul.bf16.gmra.mxu0 %v691
        %v1417 = vpop.f32.mrf.mxu0
        %v1418 = vadd.f32 %v1329, %v1417
        %v1419 = vpop.f32.mrf.mxu0
        %v1420 = vadd.f32 %v1331, %v1419
        %1421 = vmatmul.bf16.gmra.mxu0 %v698
        %v1422 = vpop.f32.mrf.mxu0
        %v1423 = vadd.f32 %v1334, %v1422
        %v1424 = vpop.f32.mrf.mxu0
        %v1425 = vadd.f32 %v1336, %v1424
        %1426 = vmatmul.bf16.gmra.mxu0 %v705
        %v1427 = vpop.f32.mrf.mxu0
        %v1428 = vadd.f32 %v1339, %v1427
        %v1429 = vpop.f32.mrf.mxu0
        %v1430 = vadd.f32 %v1341, %v1429
        %1431 = vmatmul.bf16.gmra.mxu0 %v712
        %v1432 = vpop.f32.mrf.mxu0
        %v1433 = vadd.f32 %v1344, %v1432
        %v1434 = vpop.f32.mrf.mxu0
        %v1435 = vadd.f32 %v1346, %v1434
        %1436 = vmatmul.bf16.gmra.mxu0 %v719
        %v1437 = vpop.f32.mrf.mxu0
        %v1438 = vadd.f32 %v1349, %v1437
        %v1439 = vpop.f32.mrf.mxu0
        %v1440 = vadd.f32 %v1351, %v1439
        %1441 = vmatmul.bf16.gmra.mxu0 %v726
        %v1442 = vpop.f32.mrf.mxu0
        %v1443 = vadd.f32 %v1354, %v1442
        %v1444 = vpop.f32.mrf.mxu0
        %v1445 = vadd.f32 %v1356, %v1444
        %1446 = vmatmul.bf16.gmra.mxu0 %v733
        %v1447 = vpop.f32.mrf.mxu0
        %v1448 = vadd.f32 %v1359, %v1447
        %v1449 = vpop.f32.mrf.mxu0
        %v1450 = vadd.f32 %v1361, %v1449
        %1451 = vmatmul.bf16.gmra.mxu0 %v740
        %v1452 = vpop.f32.mrf.mxu0
        %v1453 = vadd.f32 %v1364, %v1452
        %v1454 = vpop.f32.mrf.mxu0
        %v1455 = vadd.f32 %v1366, %v1454
        %1456 = vdwg.mxu0
        %1457 = vmatpush.bf16.msra.mxu0 %v1074
        %1458 = vmatpush.bf16.msra.mxu0 %v1073
        %1459 = vmatpush.bf16.msra.mxu0 %v1072
        %1460 = vmatpush.bf16.msra.mxu0 %v1071
        %1461 = vmatpush.bf16.msra.mxu0 %v1070
        %1462 = vmatpush.bf16.msra.mxu0 %v1069
        %1463 = vmatpush.bf16.msra.mxu0 %v1068
        %1464 = vmatpush.bf16.msra.mxu0 %v1067
        %1465 = vmatmul.bf16.gmra.mxu0 %v636
        %v1466 = vpop.f32.mrf.mxu0
        %v1467 = vadd.f32 %v1378, %v1466
        %v1468 = vpop.f32.mrf.mxu0
        %v1469 = vadd.f32 %v1380, %v1468
        %1470 = vmatmul.bf16.gmra.mxu0 %v643
        %v1471 = vpop.f32.mrf.mxu0
        %v1472 = vadd.f32 %v1383, %v1471
        %v1473 = vpop.f32.mrf.mxu0
        %v1474 = vadd.f32 %v1385, %v1473
        %1475 = vmatmul.bf16.gmra.mxu0 %v650
        %v1476 = vpop.f32.mrf.mxu0
        %v1477 = vadd.f32 %v1388, %v1476
        %v1478 = vpop.f32.mrf.mxu0
        %v1479 = vadd.f32 %v1390, %v1478
        %1480 = vmatmul.bf16.gmra.mxu0 %v657
        %v1481 = vpop.f32.mrf.mxu0
        %v1482 = vadd.f32 %v1393, %v1481
        %v1483 = vpop.f32.mrf.mxu0
        %v1484 = vadd.f32 %v1395, %v1483
        %1485 = vmatmul.bf16.gmra.mxu0 %v664
        %v1486 = vpop.f32.mrf.mxu0
        %v1487 = vadd.f32 %v1398, %v1486
        %v1488 = vpop.f32.mrf.mxu0
        %v1489 = vadd.f32 %v1400, %v1488
        %1490 = vmatmul.bf16.gmra.mxu0 %v671
        %v1491 = vpop.f32.mrf.mxu0
        %v1492 = vadd.f32 %v1403, %v1491
        %v1493 = vpop.f32.mrf.mxu0
        %v1494 = vadd.f32 %v1405, %v1493
        %1495 = vmatmul.bf16.gmra.mxu0 %v678
        %v1496 = vpop.f32.mrf.mxu0
        %v1497 = vadd.f32 %v1408, %v1496
        %v1498 = vpop.f32.mrf.mxu0
        %v1499 = vadd.f32 %v1410, %v1498
        %1500 = vmatmul.bf16.gmra.mxu0 %v685
        %v1501 = vpop.f32.mrf.mxu0
        %v1502 = vadd.f32 %v1413, %v1501
        %v1503 = vpop.f32.mrf.mxu0
        %v1504 = vadd.f32 %v1415, %v1503
        %1505 = vmatmul.bf16.gmra.mxu0 %v692
        %v1506 = vpop.f32.mrf.mxu0
        %v1507 = vadd.f32 %v1418, %v1506
        %v1508 = vpop.f32.mrf.mxu0
        %v1509 = vadd.f32 %v1420, %v1508
        %1510 = vmatmul.bf16.gmra.mxu0 %v699
        %v1511 = vpop.f32.mrf.mxu0
        %v1512 = vadd.f32 %v1423, %v1511
        %v1513 = vpop.f32.mrf.mxu0
        %v1514 = vadd.f32 %v1425, %v1513
        %1515 = vmatmul.bf16.gmra.mxu0 %v706
        %v1516 = vpop.f32.mrf.mxu0
        %v1517 = vadd.f32 %v1428, %v1516
        %v1518 = vpop.f32.mrf.mxu0
        %v1519 = vadd.f32 %v1430, %v1518
        %1520 = vmatmul.bf16.gmra.mxu0 %v713
        %v1521 = vpop.f32.mrf.mxu0
        %v1522 = vadd.f32 %v1433, %v1521
        %v1523 = vpop.f32.mrf.mxu0
        %v1524 = vadd.f32 %v1435, %v1523
        %1525 = vmatmul.bf16.gmra.mxu0 %v720
        %v1526 = vpop.f32.mrf.mxu0
        %v1527 = vadd.f32 %v1438, %v1526
        %v1528 = vpop.f32.mrf.mxu0
        %v1529 = vadd.f32 %v1440, %v1528
        %1530 = vmatmul.bf16.gmra.mxu0 %v727
        %v1531 = vpop.f32.mrf.mxu0
        %v1532 = vadd.f32 %v1443, %v1531
        %v1533 = vpop.f32.mrf.mxu0
        %v1534 = vadd.f32 %v1445, %v1533
        %1535 = vmatmul.bf16.gmra.mxu0 %v734
        %v1536 = vpop.f32.mrf.mxu0
        %v1537 = vadd.f32 %v1448, %v1536
        %v1538 = vpop.f32.mrf.mxu0
        %v1539 = vadd.f32 %v1450, %v1538
        %1540 = vmatmul.bf16.gmra.mxu0 %v741
        %v1541 = vpop.f32.mrf.mxu0
        %v1542 = vadd.f32 %v1453, %v1541
        %v1543 = vpop.f32.mrf.mxu0
        %v1544 = vadd.f32 %v1455, %v1543
        %1545 = vdwg.mxu0
        %1546 = vmatpush.bf16.msra.mxu0 %v1082
        %1547 = vmatpush.bf16.msra.mxu0 %v1081
        %1548 = vmatpush.bf16.msra.mxu0 %v1080
        %1549 = vmatpush.bf16.msra.mxu0 %v1079
        %1550 = vmatpush.bf16.msra.mxu0 %v1078
        %1551 = vmatpush.bf16.msra.mxu0 %v1077
        %1552 = vmatpush.bf16.msra.mxu0 %v1076
        %1553 = vmatpush.bf16.msra.mxu0 %v1075
        %1554 = vmatmul.bf16.gmra.mxu0 %v637
        %v1555 = vpop.f32.mrf.mxu0
        %v1556 = vadd.f32 %v1467, %v1555
        %v1557 = vpop.f32.mrf.mxu0
        %v1558 = vadd.f32 %v1469, %v1557
        %1559 = vmatmul.bf16.gmra.mxu0 %v644
        %v1560 = vpop.f32.mrf.mxu0
        %v1561 = vadd.f32 %v1472, %v1560
        %v1562 = vpop.f32.mrf.mxu0
        %v1563 = vadd.f32 %v1474, %v1562
        %1564 = vmatmul.bf16.gmra.mxu0 %v651
        %v1565 = vpop.f32.mrf.mxu0
        %v1566 = vadd.f32 %v1477, %v1565
        %v1567 = vpop.f32.mrf.mxu0
        %v1568 = vadd.f32 %v1479, %v1567
        %1569 = vmatmul.bf16.gmra.mxu0 %v658
        %v1570 = vpop.f32.mrf.mxu0
        %v1571 = vadd.f32 %v1482, %v1570
        %v1572 = vpop.f32.mrf.mxu0
        %v1573 = vadd.f32 %v1484, %v1572
        %1574 = vmatmul.bf16.gmra.mxu0 %v665
        %v1575 = vpop.f32.mrf.mxu0
        %v1576 = vadd.f32 %v1487, %v1575
        %v1577 = vpop.f32.mrf.mxu0
        %v1578 = vadd.f32 %v1489, %v1577
        %1579 = vmatmul.bf16.gmra.mxu0 %v672
        %v1580 = vpop.f32.mrf.mxu0
        %v1581 = vadd.f32 %v1492, %v1580
        %v1582 = vpop.f32.mrf.mxu0
        %v1583 = vadd.f32 %v1494, %v1582
        %1584 = vmatmul.bf16.gmra.mxu0 %v679
        %v1585 = vpop.f32.mrf.mxu0
        %v1586 = vadd.f32 %v1497, %v1585
        %v1587 = vpop.f32.mrf.mxu0
        %v1588 = vadd.f32 %v1499, %v1587
        %1589 = vmatmul.bf16.gmra.mxu0 %v686
        %v1590 = vpop.f32.mrf.mxu0
        %v1591 = vadd.f32 %v1502, %v1590
        %v1592 = vpop.f32.mrf.mxu0
        %v1593 = vadd.f32 %v1504, %v1592
        %1594 = vmatmul.bf16.gmra.mxu0 %v693
        %v1595 = vpop.f32.mrf.mxu0
        %v1596 = vadd.f32 %v1507, %v1595
        %v1597 = vpop.f32.mrf.mxu0
        %v1598 = vadd.f32 %v1509, %v1597
        %1599 = vmatmul.bf16.gmra.mxu0 %v700
        %v1600 = vpop.f32.mrf.mxu0
        %v1601 = vadd.f32 %v1512, %v1600
        %v1602 = vpop.f32.mrf.mxu0
        %v1603 = vadd.f32 %v1514, %v1602
        %1604 = vmatmul.bf16.gmra.mxu0 %v707
        %v1605 = vpop.f32.mrf.mxu0
        %v1606 = vadd.f32 %v1517, %v1605
        %v1607 = vpop.f32.mrf.mxu0
        %v1608 = vadd.f32 %v1519, %v1607
        %1609 = vmatmul.bf16.gmra.mxu0 %v714
        %v1610 = vpop.f32.mrf.mxu0
        %v1611 = vadd.f32 %v1522, %v1610
        %v1612 = vpop.f32.mrf.mxu0
        %v1613 = vadd.f32 %v1524, %v1612
        %1614 = vmatmul.bf16.gmra.mxu0 %v721
        %v1615 = vpop.f32.mrf.mxu0
        %v1616 = vadd.f32 %v1527, %v1615
        %v1617 = vpop.f32.mrf.mxu0
        %v1618 = vadd.f32 %v1529, %v1617
        %1619 = vmatmul.bf16.gmra.mxu0 %v728
        %v1620 = vpop.f32.mrf.mxu0
        %v1621 = vadd.f32 %v1532, %v1620
        %v1622 = vpop.f32.mrf.mxu0
        %v1623 = vadd.f32 %v1534, %v1622
        %1624 = vmatmul.bf16.gmra.mxu0 %v735
        %v1625 = vpop.f32.mrf.mxu0
        %v1626 = vadd.f32 %v1537, %v1625
        %v1627 = vpop.f32.mrf.mxu0
        %v1628 = vadd.f32 %v1539, %v1627
        %1629 = vmatmul.bf16.gmra.mxu0 %v742
        %v1630 = vpop.f32.mrf.mxu0
        %v1631 = vadd.f32 %v1542, %v1630
        %v1632 = vpop.f32.mrf.mxu0
        %v1633 = vadd.f32 %v1544, %v1632
        %1634 = vdwg.mxu0
        %1635 = vmatpush.bf16.msra.mxu0 %v1090
        %1636 = vmatpush.bf16.msra.mxu0 %v1089
        %1637 = vmatpush.bf16.msra.mxu0 %v1088
        %1638 = vmatpush.bf16.msra.mxu0 %v1087
        %1639 = vmatpush.bf16.msra.mxu0 %v1086
        %1640 = vmatpush.bf16.msra.mxu0 %v1085
        %1641 = vmatpush.bf16.msra.mxu0 %v1084
        %1642 = vmatpush.bf16.msra.mxu0 %v1083
        %1643 = vmatmul.bf16.gmra.mxu0 %v638
        %v1644 = vpop.f32.mrf.mxu0
        %v1645 = vadd.f32 %v1556, %v1644
        %v1646 = vpop.f32.mrf.mxu0
        %v1647 = vadd.f32 %v1558, %v1646
        %1648 = vmatmul.bf16.gmra.mxu0 %v645
        %v1649 = vpop.f32.mrf.mxu0
        %v1650 = vadd.f32 %v1561, %v1649
        %v1651 = vpop.f32.mrf.mxu0
        %v1652 = vadd.f32 %v1563, %v1651
        %1653 = vmatmul.bf16.gmra.mxu0 %v652
        %v1654 = vpop.f32.mrf.mxu0
        %v1655 = vadd.f32 %v1566, %v1654
        %v1656 = vpop.f32.mrf.mxu0
        %v1657 = vadd.f32 %v1568, %v1656
        %1658 = vmatmul.bf16.gmra.mxu0 %v659
        %v1659 = vpop.f32.mrf.mxu0
        %v1660 = vadd.f32 %v1571, %v1659
        %v1661 = vpop.f32.mrf.mxu0
        %v1662 = vadd.f32 %v1573, %v1661
        %1663 = vmatmul.bf16.gmra.mxu0 %v666
        %v1664 = vpop.f32.mrf.mxu0
        %v1665 = vadd.f32 %v1576, %v1664
        %v1666 = vpop.f32.mrf.mxu0
        %v1667 = vadd.f32 %v1578, %v1666
        %1668 = vmatmul.bf16.gmra.mxu0 %v673
        %v1669 = vpop.f32.mrf.mxu0
        %v1670 = vadd.f32 %v1581, %v1669
        %v1671 = vpop.f32.mrf.mxu0
        %v1672 = vadd.f32 %v1583, %v1671
        %1673 = vmatmul.bf16.gmra.mxu0 %v680
        %v1674 = vpop.f32.mrf.mxu0
        %v1675 = vadd.f32 %v1586, %v1674
        %v1676 = vpop.f32.mrf.mxu0
        %v1677 = vadd.f32 %v1588, %v1676
        %1678 = vmatmul.bf16.gmra.mxu0 %v687
        %v1679 = vpop.f32.mrf.mxu0
        %v1680 = vadd.f32 %v1591, %v1679
        %v1681 = vpop.f32.mrf.mxu0
        %v1682 = vadd.f32 %v1593, %v1681
        %1683 = vmatmul.bf16.gmra.mxu0 %v694
        %v1684 = vpop.f32.mrf.mxu0
        %v1685 = vadd.f32 %v1596, %v1684
        %v1686 = vpop.f32.mrf.mxu0
        %v1687 = vadd.f32 %v1598, %v1686
        %1688 = vmatmul.bf16.gmra.mxu0 %v701
        %v1689 = vpop.f32.mrf.mxu0
        %v1690 = vadd.f32 %v1601, %v1689
        %v1691 = vpop.f32.mrf.mxu0
        %v1692 = vadd.f32 %v1603, %v1691
        %1693 = vmatmul.bf16.gmra.mxu0 %v708
        %v1694 = vpop.f32.mrf.mxu0
        %v1695 = vadd.f32 %v1606, %v1694
        %v1696 = vpop.f32.mrf.mxu0
        %v1697 = vadd.f32 %v1608, %v1696
        %1698 = vmatmul.bf16.gmra.mxu0 %v715
        %v1699 = vpop.f32.mrf.mxu0
        %v1700 = vadd.f32 %v1611, %v1699
        %v1701 = vpop.f32.mrf.mxu0
        %v1702 = vadd.f32 %v1613, %v1701
        %1703 = vmatmul.bf16.gmra.mxu0 %v722
        %v1704 = vpop.f32.mrf.mxu0
        %v1705 = vadd.f32 %v1616, %v1704
        %v1706 = vpop.f32.mrf.mxu0
        %v1707 = vadd.f32 %v1618, %v1706
        %1708 = vmatmul.bf16.gmra.mxu0 %v729
        %v1709 = vpop.f32.mrf.mxu0
        %v1710 = vadd.f32 %v1621, %v1709
        %v1711 = vpop.f32.mrf.mxu0
        %v1712 = vadd.f32 %v1623, %v1711
        %1713 = vmatmul.bf16.gmra.mxu0 %v736
        %v1714 = vpop.f32.mrf.mxu0
        %v1715 = vadd.f32 %v1626, %v1714
        %v1716 = vpop.f32.mrf.mxu0
        %v1717 = vadd.f32 %v1628, %v1716
        %1718 = vmatmul.bf16.gmra.mxu0 %v743
        %v1719 = vpop.f32.mrf.mxu0
        %v1720 = vadd.f32 %v1631, %v1719
        %v1721 = vpop.f32.mrf.mxu0
        %v1722 = vadd.f32 %v1633, %v1721
        %1723 = vdwg.mxu0
        %1724 = vmatpush.bf16.msra.mxu0 0
        %1725 = vmatpush.bf16.msra.mxu0 0
        %1726 = vmatpush.bf16.msra.mxu0 0
        %1727 = vmatpush.bf16.msra.mxu0 0
        %1728 = vmatpush.bf16.msra.mxu0 0
        %1729 = vmatpush.bf16.msra.mxu0 0
        %1730 = vmatpush.bf16.msra.mxu0 0
        %1731 = vmatpush.bf16.msra.mxu0 %v1091
        %1732 = vmatmul.bf16.gmra.mxu0 %v1143
        %v1733 = vpop.f32.mrf.mxu0
        %v1734 = vadd.f32 %v1645, %v1733
        %v1735 = vpop.f32.mrf.mxu0
        %v1736 = vadd.f32 %v1647, %v1735
        %1737 = vmatmul.bf16.gmra.mxu0 %v1146
        %v1738 = vpop.f32.mrf.mxu0
        %v1739 = vadd.f32 %v1650, %v1738
        %v1740 = vpop.f32.mrf.mxu0
        %v1741 = vadd.f32 %v1652, %v1740
        %1742 = vmatmul.bf16.gmra.mxu0 %v1149
        %v1743 = vpop.f32.mrf.mxu0
        %v1744 = vadd.f32 %v1655, %v1743
        %v1745 = vpop.f32.mrf.mxu0
        %v1746 = vadd.f32 %v1657, %v1745
        %1747 = vmatmul.bf16.gmra.mxu0 %v1152
        %v1748 = vpop.f32.mrf.mxu0
        %v1749 = vadd.f32 %v1660, %v1748
        %v1750 = vpop.f32.mrf.mxu0
        %v1751 = vadd.f32 %v1662, %v1750
        %1752 = vmatmul.bf16.gmra.mxu0 %v1155
        %v1753 = vpop.f32.mrf.mxu0
        %v1754 = vadd.f32 %v1665, %v1753
        %v1755 = vpop.f32.mrf.mxu0
        %v1756 = vadd.f32 %v1667, %v1755
        %1757 = vmatmul.bf16.gmra.mxu0 %v1158
        %v1758 = vpop.f32.mrf.mxu0
        %v1759 = vadd.f32 %v1670, %v1758
        %v1760 = vpop.f32.mrf.mxu0
        %v1761 = vadd.f32 %v1672, %v1760
        %1762 = vmatmul.bf16.gmra.mxu0 %v1161
        %v1763 = vpop.f32.mrf.mxu0
        %v1764 = vadd.f32 %v1675, %v1763
        %v1765 = vpop.f32.mrf.mxu0
        %v1766 = vadd.f32 %v1677, %v1765
        %1767 = vmatmul.bf16.gmra.mxu0 %v1164
        %v1768 = vpop.f32.mrf.mxu0
        %v1769 = vadd.f32 %v1680, %v1768
        %v1770 = vpop.f32.mrf.mxu0
        %v1771 = vadd.f32 %v1682, %v1770
        %1772 = vmatmul.bf16.gmra.mxu0 %v1167
        %v1773 = vpop.f32.mrf.mxu0
        %v1774 = vadd.f32 %v1685, %v1773
        %v1775 = vpop.f32.mrf.mxu0
        %v1776 = vadd.f32 %v1687, %v1775
        %1777 = vmatmul.bf16.gmra.mxu0 %v1170
        %v1778 = vpop.f32.mrf.mxu0
        %v1779 = vadd.f32 %v1690, %v1778
        %v1780 = vpop.f32.mrf.mxu0
        %v1781 = vadd.f32 %v1692, %v1780
        %1782 = vmatmul.bf16.gmra.mxu0 %v1173
        %v1783 = vpop.f32.mrf.mxu0
        %v1784 = vadd.f32 %v1695, %v1783
        %v1785 = vpop.f32.mrf.mxu0
        %v1786 = vadd.f32 %v1697, %v1785
        %1787 = vmatmul.bf16.gmra.mxu0 %v1176
        %v1788 = vpop.f32.mrf.mxu0
        %v1789 = vadd.f32 %v1700, %v1788
        %v1790 = vpop.f32.mrf.mxu0
        %v1791 = vadd.f32 %v1702, %v1790
        %1792 = vmatmul.bf16.gmra.mxu0 %v1179
        %v1793 = vpop.f32.mrf.mxu0
        %v1794 = vadd.f32 %v1705, %v1793
        %v1795 = vpop.f32.mrf.mxu0
        %v1796 = vadd.f32 %v1707, %v1795
        %1797 = vmatmul.bf16.gmra.mxu0 %v1182
        %v1798 = vpop.f32.mrf.mxu0
        %v1799 = vadd.f32 %v1710, %v1798
        %v1800 = vpop.f32.mrf.mxu0
        %v1801 = vadd.f32 %v1712, %v1800
        %1802 = vmatmul.bf16.gmra.mxu0 %v1185
        %v1803 = vpop.f32.mrf.mxu0
        %v1804 = vadd.f32 %v1715, %v1803
        %v1805 = vpop.f32.mrf.mxu0
        %v1806 = vadd.f32 %v1717, %v1805
        %1807 = vmatmul.bf16.gmra.mxu0 %v1188
        %v1808 = vpop.f32.mrf.mxu0
        %v1809 = vadd.f32 %v1720, %v1808
        %v1810 = vpop.f32.mrf.mxu0
        %v1811 = vadd.f32 %v1722, %v1810
        %1812 = vdwg.mxu0
        %v1813 = vmax.f32 %v1734, 0.0
        %v1814 = vmax.f32 %v1736, 0.0
        %v1815 = vmax.f32 %v1739, 0.0
        %v1816 = vmax.f32 %v1741, 0.0
        %v1817 = vmax.f32 %v1744, 0.0
        %v1818 = vmax.f32 %v1746, 0.0
        %v1819 = vmax.f32 %v1749, 0.0
        %v1820 = vmax.f32 %v1751, 0.0
        %v1821 = vmax.f32 %v1754, 0.0
        %v1822 = vmax.f32 %v1756, 0.0
        %v1823 = vmax.f32 %v1759, 0.0
        %v1824 = vmax.f32 %v1761, 0.0
        %v1825 = vmax.f32 %v1764, 0.0
        %v1826 = vmax.f32 %v1766, 0.0
        %v1827 = vmax.f32 %v1769, 0.0
        %v1828 = vmax.f32 %v1771, 0.0
        %v1829 = vmax.f32 %v1774, 0.0
        %v1830 = vmax.f32 %v1776, 0.0
        %v1831 = vmax.f32 %v1779, 0.0
        %v1832 = vmax.f32 %v1781, 0.0
        %v1833 = vmax.f32 %v1784, 0.0
        %v1834 = vmax.f32 %v1786, 0.0
        %v1835 = vmax.f32 %v1789, 0.0
        %v1836 = vmax.f32 %v1791, 0.0
        %v1837 = vmax.f32 %v1794, 0.0
        %v1838 = vmax.f32 %v1796, 0.0
        %v1839 = vmax.f32 %v1799, 0.0
        %v1840 = vmax.f32 %v1801, 0.0
        %v1841 = vmax.f32 %v1804, 0.0
        %v1842 = vmax.f32 %v1806, 0.0
        %v1843 = vmax.f32 %v1809, 0.0
        %v1844 = vmax.f32 %v1811, 0.0
        %v1845 = vpack.c.bf16 %v1814, %v1813
        %v1846 = vpack.c.bf16 %v1816, %v1815
        %v1847 = vpack.c.bf16 %v1818, %v1817
        %v1848 = vpack.c.bf16 %v1820, %v1819
        %v1849 = vpack.c.bf16 %v1822, %v1821
        %v1850 = vpack.c.bf16 %v1824, %v1823
        %v1851 = vpack.c.bf16 %v1826, %v1825
        %v1852 = vpack.c.bf16 %v1828, %v1827
        %v1853 = vpack.c.bf16 %v1830, %v1829
        %v1854 = vpack.c.bf16 %v1832, %v1831
        %v1855 = vpack.c.bf16 %v1834, %v1833
        %v1856 = vpack.c.bf16 %v1836, %v1835
        %v1857 = vpack.c.bf16 %v1838, %v1837
        %v1858 = vpack.c.bf16 %v1840, %v1839
        %v1859 = vpack.c.bf16 %v1842, %v1841
        %v1860 = vpack.c.bf16 %v1844, %v1843
        %v1861 = vld [vmem:[#allocation7] sm:$0xf]
        %v1862 = vld [vmem:[#allocation7 + $0x4] sm:$0xf]
        %v1863 = vld [vmem:[#allocation7 + $0x8] sm:$0xf]
        %v1864 = vld [vmem:[#allocation7 + $0xc] sm:$0xf]
        %v1865 = vld [vmem:[#allocation7 + $0x10] sm:$0xf]
        %v1866 = vld [vmem:[#allocation7 + $0x14] sm:$0xf]
        %v1867 = vld [vmem:[#allocation7 + $0x18] sm:$0xf]
        %v1868 = vld [vmem:[#allocation7 + $0x1c] sm:$0xf]
        %v1869 = vld [vmem:[#allocation7 + $0x20] sm:$0xf]
        %v1870 = vld [vmem:[#allocation7 + $0x24] sm:$0xf]
        %v1871 = vld [vmem:[#allocation7 + $0x28] sm:$0xf]
        %v1872 = vld [vmem:[#allocation7 + $0x2c] sm:$0xf]
        %v1873 = vld [vmem:[#allocation7 + $0x30] sm:$0xf]
        %v1874 = vld [vmem:[#allocation7 + $0x34] sm:$0xf]
        %v1875 = vld [vmem:[#allocation7 + $0x38] sm:$0xf]
        %v1876 = vld [vmem:[#allocation7 + $0x3c] sm:$0xf]
        %v1877 = vld [vmem:[#allocation9] sm:$0x1]
        %v1879 = vperm.slane %v1877, 0
        %v1897 = vunpack.c.l.b16 %v1861
        %v1898 = vunpack.c.l.b16 %v1862
        %v1899 = vunpack.c.l.b16 %v1863
        %v1900 = vunpack.c.l.b16 %v1864
        %v1901 = vunpack.c.l.b16 %v1865
        %v1902 = vunpack.c.l.b16 %v1866
        %v1903 = vunpack.c.l.b16 %v1867
        %v1904 = vunpack.c.l.b16 %v1868
        %v1905 = vunpack.c.l.b16 %v1869
        %v1906 = vunpack.c.l.b16 %v1870
        %v1907 = vunpack.c.l.b16 %v1871
        %v1908 = vunpack.c.l.b16 %v1872
        %v1909 = vunpack.c.l.b16 %v1873
        %v1910 = vunpack.c.l.b16 %v1874
        %v1911 = vunpack.c.l.b16 %v1875
        %v1912 = vunpack.c.l.b16 %v1876
        %v1913 = vpack.c.b16 %v1898, %v1897
        %v1914 = vpack.c.b16 %v1900, %v1899
        %v1915 = vpack.c.b16 %v1902, %v1901
        %v1916 = vpack.c.b16 %v1904, %v1903
        %v1917 = vpack.c.b16 %v1906, %v1905
        %v1918 = vpack.c.b16 %v1908, %v1907
        %v1919 = vpack.c.b16 %v1910, %v1909
        %v1920 = vpack.c.b16 %v1912, %v1911
        %1929 = vmatpush.bf16.msra.mxu0 %v1920
        %1930 = vmatpush.bf16.msra.mxu0 %v1919
        %1931 = vmatpush.bf16.msra.mxu0 %v1918
        %1932 = vmatpush.bf16.msra.mxu0 %v1917
        %1933 = vmatpush.bf16.msra.mxu0 %v1916
        %1934 = vmatpush.bf16.msra.mxu0 %v1915
        %1935 = vmatpush.bf16.msra.mxu0 %v1914
        %1936 = vmatpush.bf16.msra.mxu0 %v1913
        %1937 = vmatmul.bf16.gmra.mxu0 %v1845
        %v1938 = vpop.f32.mrf.mxu0
        %v1939 = vadd.f32 %v1879, %v1938
        %v1940 = vpop.f32.mrf.mxu0
        %v1941 = vadd.f32 %v1879, %v1940
        %1942 = vmatmul.bf16.gmra.mxu0 %v1846
        %v1943 = vpop.f32.mrf.mxu0
        %v1944 = vadd.f32 %v1879, %v1943
        %v1945 = vpop.f32.mrf.mxu0
        %v1946 = vadd.f32 %v1879, %v1945
        %1947 = vmatmul.bf16.gmra.mxu0 %v1847
        %v1948 = vpop.f32.mrf.mxu0
        %v1949 = vadd.f32 %v1879, %v1948
        %v1950 = vpop.f32.mrf.mxu0
        %v1951 = vadd.f32 %v1879, %v1950
        %1952 = vmatmul.bf16.gmra.mxu0 %v1848
        %v1953 = vpop.f32.mrf.mxu0
        %v1954 = vadd.f32 %v1879, %v1953
        %v1955 = vpop.f32.mrf.mxu0
        %v1956 = vadd.f32 %v1879, %v1955
        %1957 = vmatmul.bf16.gmra.mxu0 %v1849
        %v1958 = vpop.f32.mrf.mxu0
        %v1959 = vadd.f32 %v1879, %v1958
        %v1960 = vpop.f32.mrf.mxu0
        %v1961 = vadd.f32 %v1879, %v1960
        %1962 = vmatmul.bf16.gmra.mxu0 %v1850
        %v1963 = vpop.f32.mrf.mxu0
        %v1964 = vadd.f32 %v1879, %v1963
        %v1965 = vpop.f32.mrf.mxu0
        %v1966 = vadd.f32 %v1879, %v1965
        %1967 = vmatmul.bf16.gmra.mxu0 %v1851
        %v1968 = vpop.f32.mrf.mxu0
        %v1969 = vadd.f32 %v1879, %v1968
        %v1970 = vpop.f32.mrf.mxu0
        %v1971 = vadd.f32 %v1879, %v1970
        %1972 = vmatmul.bf16.gmra.mxu0 %v1852
        %v1973 = vpop.f32.mrf.mxu0
        %v1974 = vadd.f32 %v1879, %v1973
        %v1975 = vpop.f32.mrf.mxu0
        %v1976 = vadd.f32 %v1879, %v1975
        %1977 = vmatmul.bf16.gmra.mxu0 %v1853
        %v1978 = vpop.f32.mrf.mxu0
        %v1979 = vadd.f32 %v1879, %v1978
        %v1980 = vpop.f32.mrf.mxu0
        %v1981 = vadd.f32 %v1879, %v1980
        %1982 = vmatmul.bf16.gmra.mxu0 %v1854
        %v1983 = vpop.f32.mrf.mxu0
        %v1984 = vadd.f32 %v1879, %v1983
        %v1985 = vpop.f32.mrf.mxu0
        %v1986 = vadd.f32 %v1879, %v1985
        %1987 = vmatmul.bf16.gmra.mxu0 %v1855
        %v1988 = vpop.f32.mrf.mxu0
        %v1989 = vadd.f32 %v1879, %v1988
        %v1990 = vpop.f32.mrf.mxu0
        %v1991 = vadd.f32 %v1879, %v1990
        %1992 = vmatmul.bf16.gmra.mxu0 %v1856
        %v1993 = vpop.f32.mrf.mxu0
        %v1994 = vadd.f32 %v1879, %v1993
        %v1995 = vpop.f32.mrf.mxu0
        %v1996 = vadd.f32 %v1879, %v1995
        %1997 = vmatmul.bf16.gmra.mxu0 %v1857
        %v1998 = vpop.f32.mrf.mxu0
        %v1999 = vadd.f32 %v1879, %v1998
        %v2000 = vpop.f32.mrf.mxu0
        %v2001 = vadd.f32 %v1879, %v2000
        %2002 = vmatmul.bf16.gmra.mxu0 %v1858
        %v2003 = vpop.f32.mrf.mxu0
        %v2004 = vadd.f32 %v1879, %v2003
        %v2005 = vpop.f32.mrf.mxu0
        %v2006 = vadd.f32 %v1879, %v2005
        %2007 = vmatmul.bf16.gmra.mxu0 %v1859
        %v2008 = vpop.f32.mrf.mxu0
        %v2009 = vadd.f32 %v1879, %v2008
        %v2010 = vpop.f32.mrf.mxu0
        %v2011 = vadd.f32 %v1879, %v2010
        %2012 = vmatmul.bf16.gmra.mxu0 %v1860
        %v2013 = vpop.f32.mrf.mxu0
        %v2014 = vadd.f32 %v1879, %v2013
        %v2015 = vpop.f32.mrf.mxu0
        %v2016 = vadd.f32 %v1879, %v2015
        %2017 = vdwg.mxu0
        %v2018 = vmax.f32 %v1939, 0.0
        %v2019 = vmax.f32 %v1941, 0.0
        %v2020 = vmax.f32 %v1944, 0.0
        %v2021 = vmax.f32 %v1946, 0.0
        %v2022 = vmax.f32 %v1949, 0.0
        %v2023 = vmax.f32 %v1951, 0.0
        %v2024 = vmax.f32 %v1954, 0.0
        %v2025 = vmax.f32 %v1956, 0.0
        %v2026 = vmax.f32 %v1959, 0.0
        %v2027 = vmax.f32 %v1961, 0.0
        %v2028 = vmax.f32 %v1964, 0.0
        %v2029 = vmax.f32 %v1966, 0.0
        %v2030 = vmax.f32 %v1969, 0.0
        %v2031 = vmax.f32 %v1971, 0.0
        %v2032 = vmax.f32 %v1974, 0.0
        %v2033 = vmax.f32 %v1976, 0.0
        %v2034 = vmax.f32 %v1979, 0.0
        %v2035 = vmax.f32 %v1981, 0.0
        %v2036 = vmax.f32 %v1984, 0.0
        %v2037 = vmax.f32 %v1986, 0.0
        %v2038 = vmax.f32 %v1989, 0.0
        %v2039 = vmax.f32 %v1991, 0.0
        %v2040 = vmax.f32 %v1994, 0.0
        %v2041 = vmax.f32 %v1996, 0.0
        %v2042 = vmax.f32 %v1999, 0.0
        %v2043 = vmax.f32 %v2001, 0.0
        %v2044 = vmax.f32 %v2004, 0.0
        %v2045 = vmax.f32 %v2006, 0.0
        %v2046 = vmax.f32 %v2009, 0.0
        %v2047 = vmax.f32 %v2011, 0.0
        %v2048 = vmax.f32 %v2014, 0.0
        %v2049 = vmax.f32 %v2016, 0.0
        %v2050 = vpack.c.bf16 %v2019, %v2018
        %v2051 = vpack.c.bf16 %v2021, %v2020
        %v2052 = vpack.c.bf16 %v2023, %v2022
        %v2053 = vpack.c.bf16 %v2025, %v2024
        %v2054 = vpack.c.bf16 %v2027, %v2026
        %v2055 = vpack.c.bf16 %v2029, %v2028
        %v2056 = vpack.c.bf16 %v2031, %v2030
        %v2057 = vpack.c.bf16 %v2033, %v2032
        %v2058 = vpack.c.bf16 %v2035, %v2034
        %v2059 = vpack.c.bf16 %v2037, %v2036
        %v2060 = vpack.c.bf16 %v2039, %v2038
        %v2061 = vpack.c.bf16 %v2041, %v2040
        %v2062 = vpack.c.bf16 %v2043, %v2042
        %v2063 = vpack.c.bf16 %v2045, %v2044
        %v2064 = vpack.c.bf16 %v2047, %v2046
        %v2065 = vpack.c.bf16 %v2049, %v2048
        %v2066 = vld [vmem:[#allocation10] sm:$0xf]
        %v2067 = vld [vmem:[#allocation10 + $0x4] sm:$0xf]
        %v2068 = vld [vmem:[#allocation10 + $0x8] sm:$0xf]
        %v2069 = vld [vmem:[#allocation10 + $0xc] sm:$0xf]
        %v2070 = vld [vmem:[#allocation10 + $0x10] sm:$0xf]
        %v2071 = vld [vmem:[#allocation10 + $0x14] sm:$0xf]
        %v2072 = vld [vmem:[#allocation10 + $0x18] sm:$0xf]
        %v2073 = vld [vmem:[#allocation10 + $0x1c] sm:$0xf]
        %v2074 = vld [vmem:[#allocation10 + $0x20] sm:$0xf]
        %v2075 = vld [vmem:[#allocation10 + $0x24] sm:$0xf]
        %v2076 = vld [vmem:[#allocation10 + $0x28] sm:$0xf]
        %v2077 = vld [vmem:[#allocation10 + $0x2c] sm:$0xf]
        %v2078 = vld [vmem:[#allocation10 + $0x30] sm:$0xf]
        %v2079 = vld [vmem:[#allocation10 + $0x34] sm:$0xf]
        %v2080 = vld [vmem:[#allocation10 + $0x38] sm:$0xf]
        %v2081 = vld [vmem:[#allocation10 + $0x3c] sm:$0xf]
        %v2082 = vld [vmem:[#allocation12] sm:$0x1]
        %v2084 = vperm.slane %v2082, 0
        %v2102 = vunpack.c.l.b16 %v2066
        %v2103 = vunpack.c.l.b16 %v2067
        %v2104 = vunpack.c.l.b16 %v2068
        %v2105 = vunpack.c.l.b16 %v2069
        %v2106 = vunpack.c.l.b16 %v2070
        %v2107 = vunpack.c.l.b16 %v2071
        %v2108 = vunpack.c.l.b16 %v2072
        %v2109 = vunpack.c.l.b16 %v2073
        %v2110 = vunpack.c.l.b16 %v2074
        %v2111 = vunpack.c.l.b16 %v2075
        %v2112 = vunpack.c.l.b16 %v2076
        %v2113 = vunpack.c.l.b16 %v2077
        %v2114 = vunpack.c.l.b16 %v2078
        %v2115 = vunpack.c.l.b16 %v2079
        %v2116 = vunpack.c.l.b16 %v2080
        %v2117 = vunpack.c.l.b16 %v2081
        %v2118 = vpack.c.b16 %v2103, %v2102
        %v2119 = vpack.c.b16 %v2105, %v2104
        %v2120 = vpack.c.b16 %v2107, %v2106
        %v2121 = vpack.c.b16 %v2109, %v2108
        %v2122 = vpack.c.b16 %v2111, %v2110
        %v2123 = vpack.c.b16 %v2113, %v2112
        %v2124 = vpack.c.b16 %v2115, %v2114
        %v2125 = vpack.c.b16 %v2117, %v2116
        %2134 = vmatpush.bf16.msra.mxu0 %v2125
        %2135 = vmatpush.bf16.msra.mxu0 %v2124
        %2136 = vmatpush.bf16.msra.mxu0 %v2123
        %2137 = vmatpush.bf16.msra.mxu0 %v2122
        %2138 = vmatpush.bf16.msra.mxu0 %v2121
        %2139 = vmatpush.bf16.msra.mxu0 %v2120
        %2140 = vmatpush.bf16.msra.mxu0 %v2119
        %2141 = vmatpush.bf16.msra.mxu0 %v2118
        %2142 = vmatmul.bf16.gmra.mxu0 %v2050
        %v2143 = vpop.f32.mrf.mxu0
        %v2144 = vadd.f32 %v2084, %v2143
        %v2145 = vpop.f32.mrf.mxu0
        %v2146 = vadd.f32 %v2084, %v2145
        %2147 = vmatmul.bf16.gmra.mxu0 %v2051
        %v2148 = vpop.f32.mrf.mxu0
        %v2149 = vadd.f32 %v2084, %v2148
        %v2150 = vpop.f32.mrf.mxu0
        %v2151 = vadd.f32 %v2084, %v2150
        %2152 = vmatmul.bf16.gmra.mxu0 %v2052
        %v2153 = vpop.f32.mrf.mxu0
        %v2154 = vadd.f32 %v2084, %v2153
        %v2155 = vpop.f32.mrf.mxu0
        %v2156 = vadd.f32 %v2084, %v2155
        %2157 = vmatmul.bf16.gmra.mxu0 %v2053
        %v2158 = vpop.f32.mrf.mxu0
        %v2159 = vadd.f32 %v2084, %v2158
        %v2160 = vpop.f32.mrf.mxu0
        %v2161 = vadd.f32 %v2084, %v2160
        %2162 = vmatmul.bf16.gmra.mxu0 %v2054
        %v2163 = vpop.f32.mrf.mxu0
        %v2164 = vadd.f32 %v2084, %v2163
        %v2165 = vpop.f32.mrf.mxu0
        %v2166 = vadd.f32 %v2084, %v2165
        %2167 = vmatmul.bf16.gmra.mxu0 %v2055
        %v2168 = vpop.f32.mrf.mxu0
        %v2169 = vadd.f32 %v2084, %v2168
        %v2170 = vpop.f32.mrf.mxu0
        %v2171 = vadd.f32 %v2084, %v2170
        %2172 = vmatmul.bf16.gmra.mxu0 %v2056
        %v2173 = vpop.f32.mrf.mxu0
        %v2174 = vadd.f32 %v2084, %v2173
        %v2175 = vpop.f32.mrf.mxu0
        %v2176 = vadd.f32 %v2084, %v2175
        %2177 = vmatmul.bf16.gmra.mxu0 %v2057
        %v2178 = vpop.f32.mrf.mxu0
        %v2179 = vadd.f32 %v2084, %v2178
        %v2180 = vpop.f32.mrf.mxu0
        %v2181 = vadd.f32 %v2084, %v2180
        %2182 = vmatmul.bf16.gmra.mxu0 %v2058
        %v2183 = vpop.f32.mrf.mxu0
        %v2184 = vadd.f32 %v2084, %v2183
        %v2185 = vpop.f32.mrf.mxu0
        %v2186 = vadd.f32 %v2084, %v2185
        %2187 = vmatmul.bf16.gmra.mxu0 %v2059
        %v2188 = vpop.f32.mrf.mxu0
        %v2189 = vadd.f32 %v2084, %v2188
        %v2190 = vpop.f32.mrf.mxu0
        %v2191 = vadd.f32 %v2084, %v2190
        %2192 = vmatmul.bf16.gmra.mxu0 %v2060
        %v2193 = vpop.f32.mrf.mxu0
        %v2194 = vadd.f32 %v2084, %v2193
        %v2195 = vpop.f32.mrf.mxu0
        %v2196 = vadd.f32 %v2084, %v2195
        %2197 = vmatmul.bf16.gmra.mxu0 %v2061
        %v2198 = vpop.f32.mrf.mxu0
        %v2199 = vadd.f32 %v2084, %v2198
        %v2200 = vpop.f32.mrf.mxu0
        %v2201 = vadd.f32 %v2084, %v2200
        %2202 = vmatmul.bf16.gmra.mxu0 %v2062
        %v2203 = vpop.f32.mrf.mxu0
        %v2204 = vadd.f32 %v2084, %v2203
        %v2205 = vpop.f32.mrf.mxu0
        %v2206 = vadd.f32 %v2084, %v2205
        %2207 = vmatmul.bf16.gmra.mxu0 %v2063
        %v2208 = vpop.f32.mrf.mxu0
        %v2209 = vadd.f32 %v2084, %v2208
        %v2210 = vpop.f32.mrf.mxu0
        %v2211 = vadd.f32 %v2084, %v2210
        %2212 = vmatmul.bf16.gmra.mxu0 %v2064
        %v2213 = vpop.f32.mrf.mxu0
        %v2214 = vadd.f32 %v2084, %v2213
        %v2215 = vpop.f32.mrf.mxu0
        %v2216 = vadd.f32 %v2084, %v2215
        %2217 = vmatmul.bf16.gmra.mxu0 %v2065
        %v2218 = vpop.f32.mrf.mxu0
        %v2219 = vadd.f32 %v2084, %v2218
        %v2220 = vpop.f32.mrf.mxu0
        %v2221 = vadd.f32 %v2084, %v2220
        %2222 = vdwg.mxu0
        %v2223 = vpack.c.bf16 %v2144, %v2144
        %v2224 = vpack.c.bf16 %v2146, %v2146
        %v2225 = vpack.c.bf16 %v2149, %v2149
        %v2226 = vpack.c.bf16 %v2151, %v2151
        %v2227 = vpack.c.bf16 %v2154, %v2154
        %v2228 = vpack.c.bf16 %v2156, %v2156
        %v2229 = vpack.c.bf16 %v2159, %v2159
        %v2230 = vpack.c.bf16 %v2161, %v2161
        %v2231 = vpack.c.bf16 %v2164, %v2164
        %v2232 = vpack.c.bf16 %v2166, %v2166
        %v2233 = vpack.c.bf16 %v2169, %v2169
        %v2234 = vpack.c.bf16 %v2171, %v2171
        %v2235 = vpack.c.bf16 %v2174, %v2174
        %v2236 = vpack.c.bf16 %v2176, %v2176
        %v2237 = vpack.c.bf16 %v2179, %v2179
        %v2238 = vpack.c.bf16 %v2181, %v2181
        %v2239 = vpack.c.bf16 %v2184, %v2184
        %v2240 = vpack.c.bf16 %v2186, %v2186
        %v2241 = vpack.c.bf16 %v2189, %v2189
        %v2242 = vpack.c.bf16 %v2191, %v2191
        %v2243 = vpack.c.bf16 %v2194, %v2194
        %v2244 = vpack.c.bf16 %v2196, %v2196
        %v2245 = vpack.c.bf16 %v2199, %v2199
        %v2246 = vpack.c.bf16 %v2201, %v2201
        %v2247 = vpack.c.bf16 %v2204, %v2204
        %v2248 = vpack.c.bf16 %v2206, %v2206
        %v2249 = vpack.c.bf16 %v2209, %v2209
        %v2250 = vpack.c.bf16 %v2211, %v2211
        %v2251 = vpack.c.bf16 %v2214, %v2214
        %v2252 = vpack.c.bf16 %v2216, %v2216
        %v2253 = vpack.c.bf16 %v2219, %v2219
        %v2254 = vpack.c.bf16 %v2221, %v2221
        %2255 = vst [vmem:[%s396] sm:$0xf] %v2223
        %2256 = vst [vmem:[%s396 + $0x4] sm:$0xf] %v2224
        %2257 = vst [vmem:[%s396 + $0x8] sm:$0xf] %v2225
        %2258 = vst [vmem:[%s396 + $0xc] sm:$0xf] %v2226
        %2259 = vst [vmem:[%s396 + $0x10] sm:$0xf] %v2227
        %2260 = vst [vmem:[%s396 + $0x14] sm:$0xf] %v2228
        %2261 = vst [vmem:[%s396 + $0x18] sm:$0xf] %v2229
        %2262 = vst [vmem:[%s396 + $0x1c] sm:$0xf] %v2230
        %2263 = vst [vmem:[%s396 + $0x20] sm:$0xf] %v2231
        %2264 = vst [vmem:[%s396 + $0x24] sm:$0xf] %v2232
        %2265 = vst [vmem:[%s396 + $0x28] sm:$0xf] %v2233
        %2266 = vst [vmem:[%s396 + $0x2c] sm:$0xf] %v2234
        %2267 = vst [vmem:[%s396 + $0x30] sm:$0xf] %v2235
        %2268 = vst [vmem:[%s396 + $0x34] sm:$0xf] %v2236
        %2269 = vst [vmem:[%s396 + $0x38] sm:$0xf] %v2237
        %2270 = vst [vmem:[%s396 + $0x3c] sm:$0xf] %v2238
        %2271 = vst [vmem:[%s396 + $0x40] sm:$0xf] %v2239
        %2272 = vst [vmem:[%s396 + $0x44] sm:$0xf] %v2240
        %2273 = vst [vmem:[%s396 + $0x48] sm:$0xf] %v2241
        %2274 = vst [vmem:[%s396 + $0x4c] sm:$0xf] %v2242
        %2275 = vst [vmem:[%s396 + $0x50] sm:$0xf] %v2243
        %2276 = vst [vmem:[%s396 + $0x54] sm:$0xf] %v2244
        %2277 = vst [vmem:[%s396 + $0x58] sm:$0xf] %v2245
        %2278 = vst [vmem:[%s396 + $0x5c] sm:$0xf] %v2246
        %2279 = vst [vmem:[%s396 + $0x60] sm:$0xf] %v2247
        %2280 = vst [vmem:[%s396 + $0x64] sm:$0xf] %v2248
        %2281 = vst [vmem:[%s396 + $0x68] sm:$0xf] %v2249
        %2282 = vst [vmem:[%s396 + $0x6c] sm:$0xf] %v2250
        %2283 = vst [vmem:[%s396 + $0x70] sm:$0xf] %v2251
        %2284 = vst [vmem:[%s396 + $0x74] sm:$0xf] %v2252
        %2285 = vst [vmem:[%s396 + $0x78] sm:$0xf] %v2253
        %2286 = vst [vmem:[%s396 + $0x7c] sm:$0xf] %v2254
        %s2287 = sand.u32 %s184, 1
        %s2288 = sand.u32 %s184, 1
        %s2289 = smul.addr %s2288, 128
        %s2290 = scalar_lea.vmem [#allocation13], %s2289
        // Predicated region
        $region77: #{neural_net_forward.1} parent=47 // pred_check
          %p2291 = pneg %p194
        $region78: #{neural_net_forward.1} parent=47 // pred_check_branch
          %2293 = sbr.rel (%p2291) target = $region80
        $region79: #{neural_net_forward.1} parent=47 // pred_region
          %s2294 = smul.u32 32, %s24
          %s2295 = ssub.s32 38, %s2294
          %p2296 = scmp.lt.s32.totalorder %s2295, 32
          %s2297 = scalar_select %p2296, %s2295, 32
          %s2298 = smul.u32 4, %s2297
          %p2299 = scmp.ne.s32.totalorder 0, %s2298
          %s2300 = smul.addr %s2294, 4
          %s2301 = scalar_lea.vmem %s7, %s2300
          // Predicated region
          $region81: #{neural_net_forward.1} parent=79 // pred_check
            %p2302 = pneg %p2299
          $region82: #{neural_net_forward.1} parent=79 // pred_check_branch
            %2304 = sbr.rel (%p2302) target = $region84
          $region83: #{neural_net_forward.1} parent=79 // pred_region
            // Predicated region
            $region85: #{neural_net_forward.1} parent=83 // pred_check
              _
            $region86: #{neural_net_forward.1} parent=83 // pred_check_branch
              %2306 = sbr.rel target = $region88
            $region87: #{neural_net_forward.1} parent=83 // pred_region
              // Predicated region
              $region107: #{neural_net_forward.1} parent=87 // pred_check
                _
              $region108: #{neural_net_forward.1} parent=87 // pred_check_branch
                %2418 = sbr.rel (0) target = $region110
              $region109: #{neural_net_forward.1} parent=87 // pred_region
                %s2420 = ssub.s32 16, 1
                %s2421 = sshrl.u32 %s2297, 5
                // While loop
                $region111: #{neural_net_forward.1} parent=109 // loop_pre_header
                  _
                $region112: #{neural_net_forward.1} parent=109 // loop_header
                  %s2423 = sphi 0, %s2425
                  %p2424 = scmp.ge.s32.totalorder %s2423, %s2421
                  %s2428 = sphi 0, %s2497
                  %s2429 = sphi %s2290, %s2500
                  %s2430 = sphi %s2301, %s2501
                $region113: #{neural_net_forward.1} parent=109 // loop_header_branch
                  %2427 = sbr.rel (%p2424) target = $region117
                $region114: #{neural_net_forward.1} parent=109 // loop_body
                  %v2431 = vld [vmem:[%s2429] sm:%s2420]
                  %2432 = vst [vmem:[%s2430] sm:%s2420] %v2431
                  %v2433 = vld [vmem:[%s2429 + $0x4] sm:%s2420]
                  %2434 = vst [vmem:[%s2430 + $0x4] sm:%s2420] %v2433
                  %v2435 = vld [vmem:[%s2429 + $0x8] sm:%s2420]
                  %2436 = vst [vmem:[%s2430 + $0x8] sm:%s2420] %v2435
                  %v2437 = vld [vmem:[%s2429 + $0xc] sm:%s2420]
                  %2438 = vst [vmem:[%s2430 + $0xc] sm:%s2420] %v2437
                  %v2439 = vld [vmem:[%s2429 + $0x10] sm:%s2420]
                  %2440 = vst [vmem:[%s2430 + $0x10] sm:%s2420] %v2439
                  %v2441 = vld [vmem:[%s2429 + $0x14] sm:%s2420]
                  %2442 = vst [vmem:[%s2430 + $0x14] sm:%s2420] %v2441
                  %v2443 = vld [vmem:[%s2429 + $0x18] sm:%s2420]
                  %2444 = vst [vmem:[%s2430 + $0x18] sm:%s2420] %v2443
                  %v2445 = vld [vmem:[%s2429 + $0x1c] sm:%s2420]
                  %2446 = vst [vmem:[%s2430 + $0x1c] sm:%s2420] %v2445
                  %v2447 = vld [vmem:[%s2429 + $0x20] sm:%s2420]
                  %2448 = vst [vmem:[%s2430 + $0x20] sm:%s2420] %v2447
                  %v2449 = vld [vmem:[%s2429 + $0x24] sm:%s2420]
                  %2450 = vst [vmem:[%s2430 + $0x24] sm:%s2420] %v2449
                  %v2451 = vld [vmem:[%s2429 + $0x28] sm:%s2420]
                  %2452 = vst [vmem:[%s2430 + $0x28] sm:%s2420] %v2451
                  %v2453 = vld [vmem:[%s2429 + $0x2c] sm:%s2420]
                  %2454 = vst [vmem:[%s2430 + $0x2c] sm:%s2420] %v2453
                  %v2455 = vld [vmem:[%s2429 + $0x30] sm:%s2420]
                  %2456 = vst [vmem:[%s2430 + $0x30] sm:%s2420] %v2455
                  %v2457 = vld [vmem:[%s2429 + $0x34] sm:%s2420]
                  %2458 = vst [vmem:[%s2430 + $0x34] sm:%s2420] %v2457
                  %v2459 = vld [vmem:[%s2429 + $0x38] sm:%s2420]
                  %2460 = vst [vmem:[%s2430 + $0x38] sm:%s2420] %v2459
                  %v2461 = vld [vmem:[%s2429 + $0x3c] sm:%s2420]
                  %2462 = vst [vmem:[%s2430 + $0x3c] sm:%s2420] %v2461
                  %v2463 = vld [vmem:[%s2429 + $0x40] sm:%s2420]
                  %2464 = vst [vmem:[%s2430 + $0x40] sm:%s2420] %v2463
                  %v2465 = vld [vmem:[%s2429 + $0x44] sm:%s2420]
                  %2466 = vst [vmem:[%s2430 + $0x44] sm:%s2420] %v2465
                  %v2467 = vld [vmem:[%s2429 + $0x48] sm:%s2420]
                  %2468 = vst [vmem:[%s2430 + $0x48] sm:%s2420] %v2467
                  %v2469 = vld [vmem:[%s2429 + $0x4c] sm:%s2420]
                  %2470 = vst [vmem:[%s2430 + $0x4c] sm:%s2420] %v2469
                  %v2471 = vld [vmem:[%s2429 + $0x50] sm:%s2420]
                  %2472 = vst [vmem:[%s2430 + $0x50] sm:%s2420] %v2471
                  %v2473 = vld [vmem:[%s2429 + $0x54] sm:%s2420]
                  %2474 = vst [vmem:[%s2430 + $0x54] sm:%s2420] %v2473
                  %v2475 = vld [vmem:[%s2429 + $0x58] sm:%s2420]
                  %2476 = vst [vmem:[%s2430 + $0x58] sm:%s2420] %v2475
                  %v2477 = vld [vmem:[%s2429 + $0x5c] sm:%s2420]
                  %2478 = vst [vmem:[%s2430 + $0x5c] sm:%s2420] %v2477
                  %v2479 = vld [vmem:[%s2429 + $0x60] sm:%s2420]
                  %2480 = vst [vmem:[%s2430 + $0x60] sm:%s2420] %v2479
                  %v2481 = vld [vmem:[%s2429 + $0x64] sm:%s2420]
                  %2482 = vst [vmem:[%s2430 + $0x64] sm:%s2420] %v2481
                  %v2483 = vld [vmem:[%s2429 + $0x68] sm:%s2420]
                  %2484 = vst [vmem:[%s2430 + $0x68] sm:%s2420] %v2483
                  %v2485 = vld [vmem:[%s2429 + $0x6c] sm:%s2420]
                  %2486 = vst [vmem:[%s2430 + $0x6c] sm:%s2420] %v2485
                  %v2487 = vld [vmem:[%s2429 + $0x70] sm:%s2420]
                  %2488 = vst [vmem:[%s2430 + $0x70] sm:%s2420] %v2487
                  %v2489 = vld [vmem:[%s2429 + $0x74] sm:%s2420]
                  %2490 = vst [vmem:[%s2430 + $0x74] sm:%s2420] %v2489
                  %v2491 = vld [vmem:[%s2429 + $0x78] sm:%s2420]
                  %2492 = vst [vmem:[%s2430 + $0x78] sm:%s2420] %v2491
                  %v2493 = vld [vmem:[%s2429 + $0x7c] sm:%s2420]
                  %2494 = vst [vmem:[%s2430 + $0x7c] sm:%s2420] %v2493
                  %s2495 = sadd.s32 1, %s2428
                  %p2496 = scmp.ge.s32.totalorder %s2495, %s2421
                  %s2497 = scalar_select %p2496, 0, %s2495
                  %s2498 = smul.u32 %s2497, 128
                  %s2499 = smul.u32 %s2497, 128
                  %s2500 = scalar_lea.vmem %s2290, %s2498 [#allocation13]
                  %s2501 = scalar_lea.vmem %s2301, %s2499
                $region115: #{neural_net_forward.1} parent=109 // loop_footer
                  %s2425 = sadd.s32 %s2423, 1
                $region116: #{neural_net_forward.1} parent=109 // loop_footer_branch
                  %2422 = sbr.rel target = $region112
                $region117: #{neural_net_forward.1} parent=109 // loop_exit
                  _
                %s2502 = sshrl.u32 %s2297, 5
                %s2503 = sand.u32 %s2297, 31
                %s2504 = smul.u32 %s2502, 32
                %s2505 = smul.u32 4, %s2504
                %s2506 = scalar_lea.vmem %s2290, %s2505 [#allocation13]
                %s2507 = smul.u32 4, %s2504
                %s2508 = scalar_lea.vmem %s2301, %s2507
                // While loop
                $region118: #{neural_net_forward.1} parent=109 // loop_pre_header
                  _
                $region119: #{neural_net_forward.1} parent=109 // loop_header
                  %s2510 = sphi 0, %s2512
                  %p2511 = scmp.ge.s32.totalorder %s2510, %s2503
                  %s2515 = sphi 0, %s2522
                  %s2516 = sphi %s2506, %s2525
                  %s2517 = sphi %s2508, %s2526
                $region120: #{neural_net_forward.1} parent=109 // loop_header_branch
                  %2514 = sbr.rel (%p2511) target = $region124
                $region121: #{neural_net_forward.1} parent=109 // loop_body
                  %v2518 = vld [vmem:[%s2516] sm:%s2420]
                  %2519 = vst [vmem:[%s2517] sm:%s2420] %v2518
                  %s2520 = sadd.s32 1, %s2515
                  %p2521 = scmp.ge.s32.totalorder %s2520, %s2503
                  %s2522 = scalar_select %p2521, 0, %s2520
                  %s2523 = smul.u32 %s2522, 4
                  %s2524 = smul.u32 %s2522, 4
                  %s2525 = scalar_lea.vmem %s2506, %s2523 [#allocation13]
                  %s2526 = scalar_lea.vmem %s2508, %s2524
                $region122: #{neural_net_forward.1} parent=109 // loop_footer
                  %s2512 = sadd.s32 %s2510, 1
                $region123: #{neural_net_forward.1} parent=109 // loop_footer_branch
                  %2509 = sbr.rel target = $region119
                $region124: #{neural_net_forward.1} parent=109 // loop_exit
                  _
              $region110: #{neural_net_forward.1} parent=87 // pred_fallthru
                _
            $region88: #{neural_net_forward.1} parent=83 // pred_fallthru
              _
            // Predicated region
            $region89: #{neural_net_forward.1} parent=83 // pred_check
              _
            $region90: #{neural_net_forward.1} parent=83 // pred_check_branch
              %2308 = sbr.rel (0) target = $region92
            $region91: #{neural_net_forward.1} parent=83 // pred_region
              %s2310 = ssub.s32 16, 1
              %s2311 = sshrl.u32 %s2297, 5
              // While loop
              $region93: #{neural_net_forward.1} parent=91 // loop_pre_header
                _
              $region94: #{neural_net_forward.1} parent=91 // loop_header
                %s2313 = sphi 0, %s2315
                %p2314 = scmp.ge.s32.totalorder %s2313, %s2311
                %s2318 = sphi 0, %s2387
                %s2319 = sphi %s2290, %s2390
                %s2320 = sphi %s2301, %s2391
              $region95: #{neural_net_forward.1} parent=91 // loop_header_branch
                %2317 = sbr.rel (%p2314) target = $region99
              $region96: #{neural_net_forward.1} parent=91 // loop_body
                %v2321 = vld [vmem:[%s2319] sm:%s2310]
                %2322 = vst [vmem:[%s2320] sm:%s2310] %v2321
                %v2323 = vld [vmem:[%s2319 + $0x4] sm:%s2310]
                %2324 = vst [vmem:[%s2320 + $0x4] sm:%s2310] %v2323
                %v2325 = vld [vmem:[%s2319 + $0x8] sm:%s2310]
                %2326 = vst [vmem:[%s2320 + $0x8] sm:%s2310] %v2325
                %v2327 = vld [vmem:[%s2319 + $0xc] sm:%s2310]
                %2328 = vst [vmem:[%s2320 + $0xc] sm:%s2310] %v2327
                %v2329 = vld [vmem:[%s2319 + $0x10] sm:%s2310]
                %2330 = vst [vmem:[%s2320 + $0x10] sm:%s2310] %v2329
                %v2331 = vld [vmem:[%s2319 + $0x14] sm:%s2310]
                %2332 = vst [vmem:[%s2320 + $0x14] sm:%s2310] %v2331
                %v2333 = vld [vmem:[%s2319 + $0x18] sm:%s2310]
                %2334 = vst [vmem:[%s2320 + $0x18] sm:%s2310] %v2333
                %v2335 = vld [vmem:[%s2319 + $0x1c] sm:%s2310]
                %2336 = vst [vmem:[%s2320 + $0x1c] sm:%s2310] %v2335
                %v2337 = vld [vmem:[%s2319 + $0x20] sm:%s2310]
                %2338 = vst [vmem:[%s2320 + $0x20] sm:%s2310] %v2337
                %v2339 = vld [vmem:[%s2319 + $0x24] sm:%s2310]
                %2340 = vst [vmem:[%s2320 + $0x24] sm:%s2310] %v2339
                %v2341 = vld [vmem:[%s2319 + $0x28] sm:%s2310]
                %2342 = vst [vmem:[%s2320 + $0x28] sm:%s2310] %v2341
                %v2343 = vld [vmem:[%s2319 + $0x2c] sm:%s2310]
                %2344 = vst [vmem:[%s2320 + $0x2c] sm:%s2310] %v2343
                %v2345 = vld [vmem:[%s2319 + $0x30] sm:%s2310]
                %2346 = vst [vmem:[%s2320 + $0x30] sm:%s2310] %v2345
                %v2347 = vld [vmem:[%s2319 + $0x34] sm:%s2310]
                %2348 = vst [vmem:[%s2320 + $0x34] sm:%s2310] %v2347
                %v2349 = vld [vmem:[%s2319 + $0x38] sm:%s2310]
                %2350 = vst [vmem:[%s2320 + $0x38] sm:%s2310] %v2349
                %v2351 = vld [vmem:[%s2319 + $0x3c] sm:%s2310]
                %2352 = vst [vmem:[%s2320 + $0x3c] sm:%s2310] %v2351
                %v2353 = vld [vmem:[%s2319 + $0x40] sm:%s2310]
                %2354 = vst [vmem:[%s2320 + $0x40] sm:%s2310] %v2353
                %v2355 = vld [vmem:[%s2319 + $0x44] sm:%s2310]
                %2356 = vst [vmem:[%s2320 + $0x44] sm:%s2310] %v2355
                %v2357 = vld [vmem:[%s2319 + $0x48] sm:%s2310]
                %2358 = vst [vmem:[%s2320 + $0x48] sm:%s2310] %v2357
                %v2359 = vld [vmem:[%s2319 + $0x4c] sm:%s2310]
                %2360 = vst [vmem:[%s2320 + $0x4c] sm:%s2310] %v2359
                %v2361 = vld [vmem:[%s2319 + $0x50] sm:%s2310]
                %2362 = vst [vmem:[%s2320 + $0x50] sm:%s2310] %v2361
                %v2363 = vld [vmem:[%s2319 + $0x54] sm:%s2310]
                %2364 = vst [vmem:[%s2320 + $0x54] sm:%s2310] %v2363
                %v2365 = vld [vmem:[%s2319 + $0x58] sm:%s2310]
                %2366 = vst [vmem:[%s2320 + $0x58] sm:%s2310] %v2365
                %v2367 = vld [vmem:[%s2319 + $0x5c] sm:%s2310]
                %2368 = vst [vmem:[%s2320 + $0x5c] sm:%s2310] %v2367
                %v2369 = vld [vmem:[%s2319 + $0x60] sm:%s2310]
                %2370 = vst [vmem:[%s2320 + $0x60] sm:%s2310] %v2369
                %v2371 = vld [vmem:[%s2319 + $0x64] sm:%s2310]
                %2372 = vst [vmem:[%s2320 + $0x64] sm:%s2310] %v2371
                %v2373 = vld [vmem:[%s2319 + $0x68] sm:%s2310]
                %2374 = vst [vmem:[%s2320 + $0x68] sm:%s2310] %v2373
                %v2375 = vld [vmem:[%s2319 + $0x6c] sm:%s2310]
                %2376 = vst [vmem:[%s2320 + $0x6c] sm:%s2310] %v2375
                %v2377 = vld [vmem:[%s2319 + $0x70] sm:%s2310]
                %2378 = vst [vmem:[%s2320 + $0x70] sm:%s2310] %v2377
                %v2379 = vld [vmem:[%s2319 + $0x74] sm:%s2310]
                %2380 = vst [vmem:[%s2320 + $0x74] sm:%s2310] %v2379
                %v2381 = vld [vmem:[%s2319 + $0x78] sm:%s2310]
                %2382 = vst [vmem:[%s2320 + $0x78] sm:%s2310] %v2381
                %v2383 = vld [vmem:[%s2319 + $0x7c] sm:%s2310]
                %2384 = vst [vmem:[%s2320 + $0x7c] sm:%s2310] %v2383
                %s2385 = sadd.s32 1, %s2318
                %p2386 = scmp.ge.s32.totalorder %s2385, %s2311
                %s2387 = scalar_select %p2386, 0, %s2385
                %s2388 = smul.u32 %s2387, 128
                %s2389 = smul.u32 %s2387, 128
                %s2390 = scalar_lea.vmem %s2290, %s2388 [#allocation13]
                %s2391 = scalar_lea.vmem %s2301, %s2389
              $region97: #{neural_net_forward.1} parent=91 // loop_footer
                %s2315 = sadd.s32 %s2313, 1
              $region98: #{neural_net_forward.1} parent=91 // loop_footer_branch
                %2312 = sbr.rel target = $region94
              $region99: #{neural_net_forward.1} parent=91 // loop_exit
                _
              %s2392 = sshrl.u32 %s2297, 5
              %s2393 = sand.u32 %s2297, 31
              %s2394 = smul.u32 %s2392, 32
              %s2395 = smul.u32 4, %s2394
              %s2396 = scalar_lea.vmem %s2290, %s2395 [#allocation13]
              %s2397 = smul.u32 4, %s2394
              %s2398 = scalar_lea.vmem %s2301, %s2397
              // While loop
              $region100: #{neural_net_forward.1} parent=91 // loop_pre_header
                _
              $region101: #{neural_net_forward.1} parent=91 // loop_header
                %s2400 = sphi 0, %s2402
                %p2401 = scmp.ge.s32.totalorder %s2400, %s2393
                %s2405 = sphi 0, %s2412
                %s2406 = sphi %s2396, %s2415
                %s2407 = sphi %s2398, %s2416
              $region102: #{neural_net_forward.1} parent=91 // loop_header_branch
                %2404 = sbr.rel (%p2401) target = $region106
              $region103: #{neural_net_forward.1} parent=91 // loop_body
                %v2408 = vld [vmem:[%s2406] sm:%s2310]
                %2409 = vst [vmem:[%s2407] sm:%s2310] %v2408
                %s2410 = sadd.s32 1, %s2405
                %p2411 = scmp.ge.s32.totalorder %s2410, %s2393
                %s2412 = scalar_select %p2411, 0, %s2410
                %s2413 = smul.u32 %s2412, 4
                %s2414 = smul.u32 %s2412, 4
                %s2415 = scalar_lea.vmem %s2396, %s2413 [#allocation13]
                %s2416 = scalar_lea.vmem %s2398, %s2414
              $region104: #{neural_net_forward.1} parent=91 // loop_footer
                %s2402 = sadd.s32 %s2400, 1
              $region105: #{neural_net_forward.1} parent=91 // loop_footer_branch
                %2399 = sbr.rel target = $region101
              $region106: #{neural_net_forward.1} parent=91 // loop_exit
                _
            $region92: #{neural_net_forward.1} parent=83 // pred_fallthru
              _
          $region84: #{neural_net_forward.1} parent=79 // pred_fallthru
            _
          %2527 = vnop
        $region80: #{neural_net_forward.1} parent=47 // pred_fallthru
          _
      $region48: #{neural_net_forward.1} parent=5 // pred_fallthru
        _
      %p2528 = scmp.le.s32.totalorder 2, %s19
      // Predicated region
      $region125: #{neural_net_forward.1} parent=5 // pred_check
        %p2529 = pneg %p2528
      $region126: #{neural_net_forward.1} parent=5 // pred_check_branch
        %2531 = sbr.rel (%p2529) target = $region128
      $region127: #{neural_net_forward.1} parent=5 // pred_region
        %s2532 = ssub.s32 %s19, 2
        // Predicated region
        $region129: #{neural_net_forward.1} parent=127 // pred_check
          %p2533 = pneg %p200
        $region130: #{neural_net_forward.1} parent=127 // pred_check_branch
          %2535 = sbr.rel (%p2533) target = $region132
        $region131: #{neural_net_forward.1} parent=127 // pred_region
          %s2536 = sand.u32 %s185, 1
          %s2537 = sand.u32 %s185, 1
          %s2538 = smul.addr %s2537, 128
          %s2539 = scalar_lea.vmem [#allocation13], %s2538
        $region132: #{neural_net_forward.1} parent=127 // pred_fallthru
          _
      $region128: #{neural_net_forward.1} parent=5 // pred_fallthru
        _
    $region6: #{neural_net_forward.1} parent=1 // loop_footer
      %s23 = sadd.s32 1, %s19
    $region7: #{neural_net_forward.1} parent=1 // loop_footer_branch
      %18 = sbr.rel target = $region3
    $region8: #{neural_net_forward.1} parent=1 // loop_exit
      _
    %2540 = vsyncpa [#allocation3], 1
    %s2541 = scalar_lea.sflag [#allocation3], 1
    %2542 = vsyncpa %s2541, 1
    %2543 = vsyncpa [#allocation5], 1
    %2544 = vsyncpa [#allocation8], 1
    %2545 = vsyncpa [#allocation11], 1

</llo_original>
